<compile_context>
chip_gen: v7x
topology: tpu7x:2x2x1
jax: 0.10.0
libtpu: 0.0.40
codegen_flags: <defaults>
</compile_context>

<pallas_src>
import numpy as np
import jax
import jax.numpy as jnp
from jax import lax
from jax.experimental import pallas as pl
from jax.experimental.pallas import tpu as pltpu


REVIN_EPS = 1e-5
LN_EPS = 1e-5


def _round_up(x, m):
    return ((x + m - 1) // m) * m


def _pad2(x, rows, cols):
    x = jnp.asarray(x, jnp.float32)
    return jnp.zeros((rows, cols), jnp.float32).at[:x.shape[0], :x.shape[1]].set(x)


# --------------------------------- kernel ---------------------------------
def _make_kernel(P, H, Pp, Hp):
    inv_p = 1.0 / P
    inv_h = 1.0 / H

    def _ln(x, gamma, beta, mask):
        # Padded lanes of x are exactly zero (zero-padded weights/biases/gamma/beta),
        # so the pre-sum mask is redundant; only the post-centering mask is needed.
        m = jnp.sum(x, axis=-1, keepdims=True) * inv_h
        c = jnp.where(mask, x - m, 0.0)
        v = jnp.sum(c * c, axis=-1, keepdims=True) * inv_h
        return c * lax.rsqrt(v + LN_EPS) * gamma + beta

    def kernel(text_ref, series_ref,
               w1_ref, b1_ref, w2_ref, b2_ref,        # fused [wv1 ; wp2] and wv2
               g1_ref, be1_ref, g2_ref, be2_ref,      # norm1 / norm2
               wf1_ref, bf1_ref, wf2_ref, bf2_ref,    # ffn
               wfus_ref, bfus_ref,                    # fusion_fc
               out_ref):
        series = series_ref[...]
        text = text_ref[...]

        p_mask = lax.broadcasted_iota(jnp.int32, (1, Pp), 1) < P
        h_mask = lax.broadcasted_iota(jnp.int32, (1, Hp), 1) < H

        # ---- RevIN 'norm' over the true time axis (padded lanes of series hold zeros) ----
        mean_s = jnp.sum(series, axis=-1, keepdims=True) * inv_p
        cent_s = jnp.where(p_mask, series - mean_s, 0.0)
        var_s = jnp.sum(cent_s * cent_s, axis=-1, keepdims=True) * inv_p
        rstd_s = lax.rsqrt(var_s + REVIN_EPS)     # EUP
        std_s = jnp.sqrt(var_s + REVIN_EPS)
        series_n = cent_s * rstd_s                # padded lanes stay exactly 0

        # ---- stage 1: K-fused GEMM (no zero block) + cross_att2 value GEMM ----
        sn16 = series_n.astype(jnp.bfloat16)
        tx16 = text.astype(jnp.bfloat16)          # padded lanes already zero
        cat = jnp.concatenate([sn16, tx16], axis=-1)          # [TB, 2*Pp], lane-aligned
        pre1 = jnp.dot(cat, w1_ref[...], preferred_element_type=jnp.float32) + b1_ref[...]
        attn2 = jnp.dot(sn16, w2_ref[...], preferred_element_type=jnp.float32) + b2_ref[...]

        x1 = _ln(pre1, g1_ref[...], be1_ref[...], h_mask)          # norm1
        x2 = _ln(attn2 + x1, g2_ref[...], be2_ref[...], h_mask)    # norm2

        # ---- FFN (Linear -> ReLU -> Linear; dropout = identity) ----
        h = jnp.maximum(
            jnp.dot(x2.astype(jnp.bfloat16), wf1_ref[...],
                    preferred_element_type=jnp.float32) + bf1_ref[...], 0.0)
        ffn = jnp.dot(h.astype(jnp.bfloat16), wf2_ref[...],
                      preferred_element_type=jnp.float32) + bf2_ref[...]
        x3 = _ln(ffn + x2, g2_ref[...], be2_ref[...], h_mask)      # norm2 reused (as in torch)

        # ---- fusion_fc + RevIN 'denorm' ----
        pred = jnp.dot(x3.astype(jnp.bfloat16), wfus_ref[...],
                       preferred_element_type=jnp.float32) + bfus_ref[...]
        out_ref[...] = pred * std_s + mean_s

    return kernel


# ----------------------- one-time host-side weight preparation -----------------------
def prepare_params(params, pred_len):
    """Pad / fuse / cast the torch parameters once; reuse the result across forward calls."""
    P = pred_len
    H = 2 * P
    F = 2 * H
    Pp = _round_up(P, 128)
    Hp = _round_up(H, 128)
    Fp = _round_up(F, 128)
    bf16 = jnp.bfloat16

    # K-fused stage-1 slab: rows [0:P] = cross_att1.value_proj, rows [Pp:Pp+P] = pred2_fc1.
    w1 = jnp.zeros((2 * Pp, Hp), jnp.float32)
    w1 = w1.at[:P, :H].set(params["wv1"]).at[Pp:Pp + P, :H].set(params["wp2"])

    prepped = {
        "P": P, "H": H, "F": F, "Pp": Pp, "Hp": Hp, "Fp": Fp,
        "w1": w1.astype(bf16),
        "b1": _pad2(params["bv1"] + params["bp2"], 1, Hp),
        "w2": _pad2(params["wv2"], Pp, Hp).astype(bf16),
        "b2": _pad2(params["bv2"], 1, Hp),
        "g1": _pad2(params["g1"], 1, Hp), "be1": _pad2(params["be1"], 1, Hp),
        "g2": _pad2(params["g2"], 1, Hp), "be2": _pad2(params["be2"], 1, Hp),
        "wf1": _pad2(params["wf1"], Hp, Fp).astype(bf16), "bf1": _pad2(params["bf1"], 1, Fp),
        "wf2": _pad2(params["wf2"], Fp, Hp).astype(bf16), "bf2": _pad2(params["bf2"], 1, Hp),
        "wfus": _pad2(params["wfus"], Hp, Pp).astype(bf16), "bfus": _pad2(params["bfus"], 1, Pp),
        # TODO(synk): optional fp8 storage for wf1/wf2 on v7x, gated behind an accuracy check.
    }
    return prepped


def _vmem_cap_bytes():
    try:
        phys = int(pltpu.get_tpu_info().vmem_capacity_bytes)
    except Exception:
        phys = 64 * 1024 * 1024
    if phys <= 64 * 1024 * 1024:
        return 48 * 1024 * 1024       # v7x: 64 MiB physical, leave compiler scratch headroom
    return 100 * 1024 * 1024          # v5e / v6e: 128 MiB physical


# ----------------------------------- forward -----------------------------------
def tts_cross_gt_forward(text_pred, series_pred, ground_truth, prepped, *, batch_tile=512):
    """text_pred: [B, L]; series_pred, ground_truth: [B, P, 1]  (L == P required by torch model)."""
    B, L = text_pred.shape
    P, H = prepped["P"], prepped["H"]
    Pp, Hp, Fp = prepped["Pp"], prepped["Hp"], prepped["Fp"]
    assert L == P, "torch model requires series_length == pred_len"

    weights = (prepped["w1"], prepped["b1"], prepped["w2"], prepped["b2"],
               prepped["g1"], prepped["be1"], prepped["g2"], prepped["be2"],
               prepped["wf1"], prepped["bf1"], prepped["wf2"], prepped["bf2"],
               prepped["wfus"], prepped["bfus"])
    weight_bytes = sum(int(np.prod(w.shape)) * w.dtype.itemsize for w in weights)

    def budget(tb):
        streams = 3 * 2 * tb * Pp * 4                      # 2 ins + 1 out, double-buffered f32
        work = tb * (4 * Pp + 7 * Hp + Fp) * 4             # in-flight intermediates (rough)
        return weight_bytes + streams + work

    cap = _vmem_cap_bytes()

    # ---- batch tile selection: fit VMEM, then ensure >= 2 grid steps (v7x dual-TC) ----
    TB = min(batch_tile, _round_up(B, 8))
    while TB > 8 and budget(TB) > int(cap * 0.85):
        TB = max(8, _round_up(TB // 2, 8))
    if _round_up(B, TB) // TB < 2 and TB > 8:
        TB = max(8, _round_up((TB + 1) // 2, 8))
    Bp = _round_up(B, TB)
    grid = (Bp // TB,)

    vmem_limit = int(min(cap, max(budget(TB) + 8 * 1024 * 1024, 32 * 1024 * 1024)))

    # ---- per-call input padding (only per-call device work besides the kernel) ----
    series2d = series_pred[:, :, 0].astype(jnp.float32)
    gt2d = ground_truth[:, :, 0].astype(jnp.float32)
    text32 = text_pred.astype(jnp.float32)
    text_p = _pad2(text32, Bp, Pp)
    series_p = _pad2(series2d, Bp, Pp)

    batch_spec = pl.BlockSpec((TB, Pp), lambda i: (i, 0))
    out_specs = pl.BlockSpec((TB, Pp), lambda i: (i, 0))

    flops = 2 * Bp * (2 * Pp * Hp + Pp * Hp + Hp * Fp + Fp * Hp + Hp * Pp)
    bytes_accessed = 3 * Bp * Pp * 4 + weight_bytes
    cost = pl.CostEstimate(flops=flops, transcendentals=6 * Bp, bytes_accessed=bytes_accessed)

    kernel = _make_kernel(P, H, Pp, Hp)

    def run(single_buffer_weights):
        def const_spec(shape):
            if single_buffer_weights:
                # fetched once, single-buffered -> halves resident weight VMEM
                return pl.BlockSpec(shape, lambda i: (0, 0), pipeline_mode=pl.Buffered(1))
            return pl.BlockSpec(shape, lambda i: (0, 0))

        in_specs = [batch_spec, batch_spec] + [const_spec(tuple(w.shape)) for w in weights]
        return pl.pallas_call(
            kernel,
            out_shape=jax.ShapeDtypeStruct((Bp, Pp), jnp.float32),
            grid=grid,
            in_specs=in_specs,
            out_specs=out_specs,
            compiler_params=pltpu.CompilerParams(
                dimension_semantics=("parallel",),   # shards batch tiles across TCs on v7x
                vmem_limit_bytes=vmem_limit,
            ),
            cost_estimate=cost,
        )(text_p, series_p, *weights)

    try:
        out_padded = run(True)
    except Exception:
        # TODO(synk): this jax version rejected pl.Buffered(1); fall back to default buffering.
        out_padded = run(False)

    outputs = out_padded[:B, :P][:, :, None]   # prediction.unsqueeze(2) -> RevIN denorm -> [B, P, 1]
    # TODO(synk): series/ground_truth denorm(norm(x)) round-trips returned as the exact inputs
    # (bit-exact identity) rather than the ~1e-7-perturbed torch round-trip.
    return outputs, series2d, text_pred, gt2d


# ----------------------- pure-JAX reference (torch-faithful math, f32) -----------------------
def _ln_ref(x, gamma, beta):
    m = jnp.mean(x, axis=-1, keepdims=True)
    v = jnp.mean((x - m) ** 2, axis=-1, keepdims=True)
    return (x - m) / jnp.sqrt(v + LN_EPS) * gamma + beta


def _reference(text_pred, series_pred, ground_truth, p):
    series = series_pred[:, :, 0]
    gt = ground_truth[:, :, 0]
    m_s = series.mean(1, keepdims=True)
    s_s = jnp.sqrt(((series - m_s) ** 2).mean(1, keepdims=True) + REVIN_EPS)
    sn = (series - m_s) / s_s
    m_g = gt.mean(1, keepdims=True)
    s_g = jnp.sqrt(((gt - m_g) ** 2).mean(1, keepdims=True) + REVIN_EPS)
    gn = (gt - m_g) / s_g

    attn_out = sn @ p["wv1"] + p["bv1"]
    text_proj = text_pred @ p["wp2"] + p["bp2"]
    x1 = _ln_ref(attn_out + text_proj, p["g1"], p["be1"])
    attn2 = sn @ p["wv2"] + p["bv2"]
    x2 = _ln_ref(attn2 + x1, p["g2"], p["be2"])
    h = jnp.maximum(x2 @ p["wf1"] + p["bf1"], 0.0)
    ffn = h @ p["wf2"] + p["bf2"]
    x3 = _ln_ref(ffn + x2, p["g2"], p["be2"])
    pred = x3 @ p["wfus"] + p["bfus"]
    out = (pred * s_s + m_s)[:, :, None]
    return out, sn * s_s + m_s, text_pred, gn * s_g + m_g


def make_params(key, pred_len, series_length):
    hidden = pred_len * 2
    ks = jax.random.split(key, 16)

    def lin(k, fan_in, fan_out):
        kw, kb = jax.random.split(k)
        bound = 1.0 / np.sqrt(fan_in)
        w = jax.random.uniform(kw, (fan_in, fan_out), jnp.float32, -bound, bound)
        b = jax.random.uniform(kb, (1, fan_out), jnp.float32, -bound, bound)
        return w, b

    p = {}
    p["wv1"], p["bv1"] = lin(ks[0], pred_len, hidden)          # cross_att1.value_proj
    p["wp2"], p["bp2"] = lin(ks[1], pred_len, hidden)          # pred2_fc1
    p["wv2"], p["bv2"] = lin(ks[2], pred_len, hidden)          # cross_att2.value_proj
    p["wf1"], p["bf1"] = lin(ks[3], hidden, hidden * 2)        # ffn[0]
    p["wf2"], p["bf2"] = lin(ks[4], hidden * 2, hidden)        # ffn[2]
    p["wfus"], p["bfus"] = lin(ks[5], hidden, pred_len)        # fusion_fc
    p["g1"] = jnp.ones((1, hidden), jnp.float32)
    p["be1"] = jnp.zeros((1, hidden), jnp.float32)
    p["g2"] = jnp.ones((1, hidden), jnp.float32)
    p["be2"] = jnp.zeros((1, hidden), jnp.float32)
    return p


if __name__ == "__main__":
    B = 2
    pred_len = 8
    series_length = 8  # must equal pred_len for the torch forward to be well-formed
    key = jax.random.PRNGKey(0)
    k1, k2, k3, kp = jax.random.split(key, 4)

    text_pred = jax.random.normal(k1, (B, series_length), jnp.float32)
    series_pred = jax.random.normal(k2, (B, pred_len, 1), jnp.float32)
    ground_truth = jax.random.normal(k3, (B, pred_len, 1), jnp.float32)
    params = make_params(kp, pred_len, series_length)

    prepped = prepare_params(params, pred_len)     # one-time weight padding / fusion / bf16 cast

    outs = tts_cross_gt_forward(text_pred, series_pred, ground_truth, prepped)
    outs = jax.block_until_ready(outs)

    refs = _reference(text_pred, series_pred, ground_truth, params)
    # prediction path uses bf16 weights (f32 accumulation) -> loosened tolerance vs f32 reference
    np.testing.assert_allclose(np.asarray(outs[0]), np.asarray(refs[0]), rtol=5e-2, atol=5e-2)
    # pass-through outputs (series / text / ground truth)
    for o, r in zip(outs[1:], refs[1:]):
        np.testing.assert_allclose(np.asarray(o), np.asarray(r), rtol=1e-4, atol=1e-5)

    print("KERNEL_OK")
</pallas_src>

<mosaic_0001>
module attributes {stable_mosaic.version = 11 : i64} {
  func.func @kernel(%arg0: i32, %arg1: memref<8x128xf32, #tpu.memory_space<vmem>>, %arg2: memref<8x128xf32, #tpu.memory_space<vmem>>, %arg3: memref<256x128xbf16, #tpu.memory_space<vmem>>, %arg4: memref<1x128xf32, #tpu.memory_space<vmem>>, %arg5: memref<128x128xbf16, #tpu.memory_space<vmem>>, %arg6: memref<1x128xf32, #tpu.memory_space<vmem>>, %arg7: memref<1x128xf32, #tpu.memory_space<vmem>>, %arg8: memref<1x128xf32, #tpu.memory_space<vmem>>, %arg9: memref<1x128xf32, #tpu.memory_space<vmem>>, %arg10: memref<1x128xf32, #tpu.memory_space<vmem>>, %arg11: memref<128x128xbf16, #tpu.memory_space<vmem>>, %arg12: memref<1x128xf32, #tpu.memory_space<vmem>>, %arg13: memref<128x128xbf16, #tpu.memory_space<vmem>>, %arg14: memref<1x128xf32, #tpu.memory_space<vmem>>, %arg15: memref<128x128xbf16, #tpu.memory_space<vmem>>, %arg16: memref<1x128xf32, #tpu.memory_space<vmem>>, %arg17: memref<8x128xf32, #tpu.memory_space<vmem>>) attributes {dimension_semantics = [#tpu.dimension_semantics<parallel>], iteration_bounds = array<i64: 1>, scalar_prefetch = 0 : i64, scratch_operands = 0 : i64, tpu.core_type = #tpu.core_type<tc>, window_params = [{transform_indices = @transform_0, window_bounds = array<i64: 8, 128>}, {transform_indices = @transform_1, window_bounds = array<i64: 8, 128>}, {pipeline_mode = #tpu.pipeline_mode<synchronous>, transform_indices = @transform_2, window_bounds = array<i64: 256, 128>}, {pipeline_mode = #tpu.pipeline_mode<synchronous>, transform_indices = @transform_3, window_bounds = array<i64: 1, 128>}, {pipeline_mode = #tpu.pipeline_mode<synchronous>, transform_indices = @transform_4, window_bounds = array<i64: 128, 128>}, {pipeline_mode = #tpu.pipeline_mode<synchronous>, transform_indices = @transform_5, window_bounds = array<i64: 1, 128>}, {pipeline_mode = #tpu.pipeline_mode<synchronous>, transform_indices = @transform_6, window_bounds = array<i64: 1, 128>}, {pipeline_mode = #tpu.pipeline_mode<synchronous>, transform_indices = @transform_7, window_bounds = array<i64: 1, 128>}, {pipeline_mode = #tpu.pipeline_mode<synchronous>, transform_indices = @transform_8, window_bounds = array<i64: 1, 128>}, {pipeline_mode = #tpu.pipeline_mode<synchronous>, transform_indices = @transform_9, window_bounds = array<i64: 1, 128>}, {pipeline_mode = #tpu.pipeline_mode<synchronous>, transform_indices = @transform_10, window_bounds = array<i64: 128, 128>}, {pipeline_mode = #tpu.pipeline_mode<synchronous>, transform_indices = @transform_11, window_bounds = array<i64: 1, 128>}, {pipeline_mode = #tpu.pipeline_mode<synchronous>, transform_indices = @transform_12, window_bounds = array<i64: 128, 128>}, {pipeline_mode = #tpu.pipeline_mode<synchronous>, transform_indices = @transform_13, window_bounds = array<i64: 1, 128>}, {pipeline_mode = #tpu.pipeline_mode<synchronous>, transform_indices = @transform_14, window_bounds = array<i64: 128, 128>}, {pipeline_mode = #tpu.pipeline_mode<synchronous>, transform_indices = @transform_15, window_bounds = array<i64: 1, 128>}, {transform_indices = @transform_16, window_bounds = array<i64: 8, 128>}]} {
    %c0 = arith.constant 0 : index
    %c0_0 = arith.constant 0 : index
    %0 = vector.load %arg2[%c0, %c0_0] : memref<8x128xf32, #tpu.memory_space<vmem>>, vector<8x128xf32>
    %c0_1 = arith.constant 0 : index
    %c0_2 = arith.constant 0 : index
    %1 = vector.load %arg1[%c0_1, %c0_2] : memref<8x128xf32, #tpu.memory_space<vmem>>, vector<8x128xf32>
    %2 = tpu.iota {dimensions = array<i32: 1>} : vector<1x128xi32>
    %c8_i32 = arith.constant 8 : i32
    %3 = vector.broadcast %c8_i32 : i32 to vector<1x128xi32>
    %4 = arith.cmpi slt, %2, %3 : vector<1x128xi32>
    %5 = tpu.iota {dimensions = array<i32: 1>} : vector<1x128xi32>
    %c16_i32 = arith.constant 16 : i32
    %6 = vector.broadcast %c16_i32 : i32 to vector<1x128xi32>
    %7 = arith.cmpi slt, %5, %6 : vector<1x128xi32>
    %cst = arith.constant dense<0.000000e+00> : vector<8xf32>
    %8 = vector.multi_reduction <add>, %0, %cst [1] : vector<8x128xf32> to vector<8xf32>
    %9 = vector.shape_cast %8 : vector<8xf32> to vector<8x1xf32>
    %cst_3 = arith.constant 1.250000e-01 : f32
    %10 = vector.broadcast %cst_3 : f32 to vector<8x1xf32>
    %11 = arith.mulf %9, %10 : vector<8x1xf32>
    %12 = vector.broadcast %11 : vector<8x1xf32> to vector<8x128xf32>
    %13 = arith.subf %0, %12 : vector<8x128xf32>
    %cst_4 = arith.constant 0.000000e+00 : f32
    %14 = vector.shape_cast %4 : vector<1x128xi1> to vector<1x128xi1>
    %15 = vector.broadcast %14 : vector<1x128xi1> to vector<8x128xi1>
    %16 = vector.broadcast %cst_4 : f32 to vector<8x128xf32>
    %17 = arith.select %15, %13, %16 : vector<8x128xi1>, vector<8x128xf32>
    %18 = arith.mulf %17, %17 : vector<8x128xf32>
    %cst_5 = arith.constant dense<0.000000e+00> : vector<8xf32>
    %19 = vector.multi_reduction <add>, %18, %cst_5 [1] : vector<8x128xf32> to vector<8xf32>
    %20 = vector.shape_cast %19 : vector<8xf32> to vector<8x1xf32>
    %cst_6 = arith.constant 1.250000e-01 : f32
    %21 = vector.broadcast %cst_6 : f32 to vector<8x1xf32>
    %22 = arith.mulf %20, %21 : vector<8x1xf32>
    %cst_7 = arith.constant 9.99999974E-6 : f32
    %23 = vector.broadcast %cst_7 : f32 to vector<8x1xf32>
    %24 = arith.addf %22, %23 : vector<8x1xf32>
    %25 = math.rsqrt %24 : vector<8x1xf32>
    %cst_8 = arith.constant 9.99999974E-6 : f32
    %26 = vector.broadcast %cst_8 : f32 to vector<8x1xf32>
    %27 = arith.addf %22, %26 : vector<8x1xf32>
    %28 = math.sqrt %27 : vector<8x1xf32>
    %29 = vector.broadcast %25 : vector<8x1xf32> to vector<8x128xf32>
    %30 = arith.mulf %17, %29 : vector<8x128xf32>
    %31 = arith.truncf %30 : vector<8x128xf32> to vector<8x128xbf16>
    %32 = arith.truncf %1 : vector<8x128xf32> to vector<8x128xbf16>
    %33 = tpu.concatenate %31, %32 in 1 : vector<8x128xbf16>, vector<8x128xbf16> -> vector<8x256xbf16>
    %c0_9 = arith.constant 0 : index
    %c0_10 = arith.constant 0 : index
    %34 = vector.load %arg3[%c0_9, %c0_10] : memref<256x128xbf16, #tpu.memory_space<vmem>>, vector<256x128xbf16>
    %cst_11 = arith.constant dense<0.000000e+00> : vector<8x128xf32>
    %35 = tpu.matmul %33, %34, %cst_11 {dimension_numbers = #tpu.dot_dimension_numbers<[1], [0], [0], [1], [0, 0, 1, 1], [], []>} : vector<8x256xbf16>, vector<256x128xbf16>, vector<8x128xf32> -> vector<8x128xf32>
    %c0_12 = arith.constant 0 : index
    %c0_13 = arith.constant 0 : index
    %36 = vector.load %arg4[%c0_12, %c0_13] : memref<1x128xf32, #tpu.memory_space<vmem>>, vector<1x128xf32>
    %37 = vector.broadcast %36 : vector<1x128xf32> to vector<8x128xf32>
    %38 = arith.addf %35, %37 : vector<8x128xf32>
    %c0_14 = arith.constant 0 : index
    %c0_15 = arith.constant 0 : index
    %39 = vector.load %arg5[%c0_14, %c0_15] : memref<128x128xbf16, #tpu.memory_space<vmem>>, vector<128x128xbf16>
    %cst_16 = arith.constant dense<0.000000e+00> : vector<8x128xf32>
    %40 = tpu.matmul %31, %39, %cst_16 {dimension_numbers = #tpu.dot_dimension_numbers<[1], [0], [0], [1], [0, 0, 1, 1], [], []>} : vector<8x128xbf16>, vector<128x128xbf16>, vector<8x128xf32> -> vector<8x128xf32>
    %c0_17 = arith.constant 0 : index
    %c0_18 = arith.constant 0 : index
    %41 = vector.load %arg6[%c0_17, %c0_18] : memref<1x128xf32, #tpu.memory_space<vmem>>, vector<1x128xf32>
    %42 = vector.broadcast %41 : vector<1x128xf32> to vector<8x128xf32>
    %43 = arith.addf %40, %42 : vector<8x128xf32>
    %c0_19 = arith.constant 0 : index
    %c0_20 = arith.constant 0 : index
    %44 = vector.load %arg7[%c0_19, %c0_20] : memref<1x128xf32, #tpu.memory_space<vmem>>, vector<1x128xf32>
    %c0_21 = arith.constant 0 : index
    %c0_22 = arith.constant 0 : index
    %45 = vector.load %arg8[%c0_21, %c0_22] : memref<1x128xf32, #tpu.memory_space<vmem>>, vector<1x128xf32>
    %cst_23 = arith.constant dense<0.000000e+00> : vector<8xf32>
    %46 = vector.multi_reduction <add>, %38, %cst_23 [1] : vector<8x128xf32> to vector<8xf32>
    %47 = vector.shape_cast %46 : vector<8xf32> to vector<8x1xf32>
    %cst_24 = arith.constant 6.250000e-02 : f32
    %48 = vector.broadcast %cst_24 : f32 to vector<8x1xf32>
    %49 = arith.mulf %47, %48 : vector<8x1xf32>
    %50 = vector.broadcast %49 : vector<8x1xf32> to vector<8x128xf32>
    %51 = arith.subf %38, %50 : vector<8x128xf32>
    %cst_25 = arith.constant 0.000000e+00 : f32
    %52 = vector.shape_cast %7 : vector<1x128xi1> to vector<1x128xi1>
    %53 = vector.broadcast %52 : vector<1x128xi1> to vector<8x128xi1>
    %54 = vector.broadcast %cst_25 : f32 to vector<8x128xf32>
    %55 = arith.select %53, %51, %54 : vector<8x128xi1>, vector<8x128xf32>
    %56 = arith.mulf %55, %55 : vector<8x128xf32>
    %cst_26 = arith.constant dense<0.000000e+00> : vector<8xf32>
    %57 = vector.multi_reduction <add>, %56, %cst_26 [1] : vector<8x128xf32> to vector<8xf32>
    %58 = vector.shape_cast %57 : vector<8xf32> to vector<8x1xf32>
    %cst_27 = arith.constant 6.250000e-02 : f32
    %59 = vector.broadcast %cst_27 : f32 to vector<8x1xf32>
    %60 = arith.mulf %58, %59 : vector<8x1xf32>
    %cst_28 = arith.constant 9.99999974E-6 : f32
    %61 = vector.broadcast %cst_28 : f32 to vector<8x1xf32>
    %62 = arith.addf %60, %61 : vector<8x1xf32>
    %63 = math.rsqrt %62 : vector<8x1xf32>
    %64 = vector.broadcast %63 : vector<8x1xf32> to vector<8x128xf32>
    %65 = arith.mulf %55, %64 : vector<8x128xf32>
    %66 = vector.broadcast %44 : vector<1x128xf32> to vector<8x128xf32>
    %67 = arith.mulf %65, %66 : vector<8x128xf32>
    %68 = vector.broadcast %45 : vector<1x128xf32> to vector<8x128xf32>
    %69 = arith.addf %67, %68 : vector<8x128xf32>
    %70 = arith.addf %43, %69 : vector<8x128xf32>
    %c0_29 = arith.constant 0 : index
    %c0_30 = arith.constant 0 : index
    %71 = vector.load %arg9[%c0_29, %c0_30] : memref<1x128xf32, #tpu.memory_space<vmem>>, vector<1x128xf32>
    %c0_31 = arith.constant 0 : index
    %c0_32 = arith.constant 0 : index
    %72 = vector.load %arg10[%c0_31, %c0_32] : memref<1x128xf32, #tpu.memory_space<vmem>>, vector<1x128xf32>
    %cst_33 = arith.constant dense<0.000000e+00> : vector<8xf32>
    %73 = vector.multi_reduction <add>, %70, %cst_33 [1] : vector<8x128xf32> to vector<8xf32>
    %74 = vector.shape_cast %73 : vector<8xf32> to vector<8x1xf32>
    %cst_34 = arith.constant 6.250000e-02 : f32
    %75 = vector.broadcast %cst_34 : f32 to vector<8x1xf32>
    %76 = arith.mulf %74, %75 : vector<8x1xf32>
    %77 = vector.broadcast %76 : vector<8x1xf32> to vector<8x128xf32>
    %78 = arith.subf %70, %77 : vector<8x128xf32>
    %cst_35 = arith.constant 0.000000e+00 : f32
    %79 = vector.shape_cast %7 : vector<1x128xi1> to vector<1x128xi1>
    %80 = vector.broadcast %79 : vector<1x128xi1> to vector<8x128xi1>
    %81 = vector.broadcast %cst_35 : f32 to vector<8x128xf32>
    %82 = arith.select %80, %78, %81 : vector<8x128xi1>, vector<8x128xf32>
    %83 = arith.mulf %82, %82 : vector<8x128xf32>
    %cst_36 = arith.constant dense<0.000000e+00> : vector<8xf32>
    %84 = vector.multi_reduction <add>, %83, %cst_36 [1] : vector<8x128xf32> to vector<8xf32>
    %85 = vector.shape_cast %84 : vector<8xf32> to vector<8x1xf32>
    %cst_37 = arith.constant 6.250000e-02 : f32
    %86 = vector.broadcast %cst_37 : f32 to vector<8x1xf32>
    %87 = arith.mulf %85, %86 : vector<8x1xf32>
    %cst_38 = arith.constant 9.99999974E-6 : f32
    %88 = vector.broadcast %cst_38 : f32 to vector<8x1xf32>
    %89 = arith.addf %87, %88 : vector<8x1xf32>
    %90 = math.rsqrt %89 : vector<8x1xf32>
    %91 = vector.broadcast %90 : vector<8x1xf32> to vector<8x128xf32>
    %92 = arith.mulf %82, %91 : vector<8x128xf32>
    %93 = vector.broadcast %71 : vector<1x128xf32> to vector<8x128xf32>
    %94 = arith.mulf %92, %93 : vector<8x128xf32>
    %95 = vector.broadcast %72 : vector<1x128xf32> to vector<8x128xf32>
    %96 = arith.addf %94, %95 : vector<8x128xf32>
    %97 = arith.truncf %96 : vector<8x128xf32> to vector<8x128xbf16>
    %c0_39 = arith.constant 0 : index
    %c0_40 = arith.constant 0 : index
    %98 = vector.load %arg11[%c0_39, %c0_40] : memref<128x128xbf16, #tpu.memory_space<vmem>>, vector<128x128xbf16>
    %cst_41 = arith.constant dense<0.000000e+00> : vector<8x128xf32>
    %99 = tpu.matmul %97, %98, %cst_41 {dimension_numbers = #tpu.dot_dimension_numbers<[1], [0], [0], [1], [0, 0, 1, 1], [], []>} : vector<8x128xbf16>, vector<128x128xbf16>, vector<8x128xf32> -> vector<8x128xf32>
    %c0_42 = arith.constant 0 : index
    %c0_43 = arith.constant 0 : index
    %100 = vector.load %arg12[%c0_42, %c0_43] : memref<1x128xf32, #tpu.memory_space<vmem>>, vector<1x128xf32>
    %101 = vector.broadcast %100 : vector<1x128xf32> to vector<8x128xf32>
    %102 = arith.addf %99, %101 : vector<8x128xf32>
    %cst_44 = arith.constant 0.000000e+00 : f32
    %103 = vector.broadcast %cst_44 : f32 to vector<8x128xf32>
    %104 = arith.maximumf %102, %103 : vector<8x128xf32>
    %105 = arith.truncf %104 : vector<8x128xf32> to vector<8x128xbf16>
    %c0_45 = arith.constant 0 : index
    %c0_46 = arith.constant 0 : index
    %106 = vector.load %arg13[%c0_45, %c0_46] : memref<128x128xbf16, #tpu.memory_space<vmem>>, vector<128x128xbf16>
    %cst_47 = arith.constant dense<0.000000e+00> : vector<8x128xf32>
    %107 = tpu.matmul %105, %106, %cst_47 {dimension_numbers = #tpu.dot_dimension_numbers<[1], [0], [0], [1], [0, 0, 1, 1], [], []>} : vector<8x128xbf16>, vector<128x128xbf16>, vector<8x128xf32> -> vector<8x128xf32>
    %c0_48 = arith.constant 0 : index
    %c0_49 = arith.constant 0 : index
    %108 = vector.load %arg14[%c0_48, %c0_49] : memref<1x128xf32, #tpu.memory_space<vmem>>, vector<1x128xf32>
    %109 = vector.broadcast %108 : vector<1x128xf32> to vector<8x128xf32>
    %110 = arith.addf %107, %109 : vector<8x128xf32>
    %111 = arith.addf %110, %96 : vector<8x128xf32>
    %c0_50 = arith.constant 0 : index
    %c0_51 = arith.constant 0 : index
    %112 = vector.load %arg9[%c0_50, %c0_51] : memref<1x128xf32, #tpu.memory_space<vmem>>, vector<1x128xf32>
    %c0_52 = arith.constant 0 : index
    %c0_53 = arith.constant 0 : index
    %113 = vector.load %arg10[%c0_52, %c0_53] : memref<1x128xf32, #tpu.memory_space<vmem>>, vector<1x128xf32>
    %cst_54 = arith.constant dense<0.000000e+00> : vector<8xf32>
    %114 = vector.multi_reduction <add>, %111, %cst_54 [1] : vector<8x128xf32> to vector<8xf32>
    %115 = vector.shape_cast %114 : vector<8xf32> to vector<8x1xf32>
    %cst_55 = arith.constant 6.250000e-02 : f32
    %116 = vector.broadcast %cst_55 : f32 to vector<8x1xf32>
    %117 = arith.mulf %115, %116 : vector<8x1xf32>
    %118 = vector.broadcast %117 : vector<8x1xf32> to vector<8x128xf32>
    %119 = arith.subf %111, %118 : vector<8x128xf32>
    %cst_56 = arith.constant 0.000000e+00 : f32
    %120 = vector.shape_cast %7 : vector<1x128xi1> to vector<1x128xi1>
    %121 = vector.broadcast %120 : vector<1x128xi1> to vector<8x128xi1>
    %122 = vector.broadcast %cst_56 : f32 to vector<8x128xf32>
    %123 = arith.select %121, %119, %122 : vector<8x128xi1>, vector<8x128xf32>
    %124 = arith.mulf %123, %123 : vector<8x128xf32>
    %cst_57 = arith.constant dense<0.000000e+00> : vector<8xf32>
    %125 = vector.multi_reduction <add>, %124, %cst_57 [1] : vector<8x128xf32> to vector<8xf32>
    %126 = vector.shape_cast %125 : vector<8xf32> to vector<8x1xf32>
    %cst_58 = arith.constant 6.250000e-02 : f32
    %127 = vector.broadcast %cst_58 : f32 to vector<8x1xf32>
    %128 = arith.mulf %126, %127 : vector<8x1xf32>
    %cst_59 = arith.constant 9.99999974E-6 : f32
    %129 = vector.broadcast %cst_59 : f32 to vector<8x1xf32>
    %130 = arith.addf %128, %129 : vector<8x1xf32>
    %131 = math.rsqrt %130 : vector<8x1xf32>
    %132 = vector.broadcast %131 : vector<8x1xf32> to vector<8x128xf32>
    %133 = arith.mulf %123, %132 : vector<8x128xf32>
    %134 = vector.broadcast %112 : vector<1x128xf32> to vector<8x128xf32>
    %135 = arith.mulf %133, %134 : vector<8x128xf32>
    %136 = vector.broadcast %113 : vector<1x128xf32> to vector<8x128xf32>
    %137 = arith.addf %135, %136 : vector<8x128xf32>
    %138 = arith.truncf %137 : vector<8x128xf32> to vector<8x128xbf16>
    %c0_60 = arith.constant 0 : index
    %c0_61 = arith.constant 0 : index
    %139 = vector.load %arg15[%c0_60, %c0_61] : memref<128x128xbf16, #tpu.memory_space<vmem>>, vector<128x128xbf16>
    %cst_62 = arith.constant dense<0.000000e+00> : vector<8x128xf32>
    %140 = tpu.matmul %138, %139, %cst_62 {dimension_numbers = #tpu.dot_dimension_numbers<[1], [0], [0], [1], [0, 0, 1, 1], [], []>} : vector<8x128xbf16>, vector<128x128xbf16>, vector<8x128xf32> -> vector<8x128xf32>
    %c0_63 = arith.constant 0 : index
    %c0_64 = arith.constant 0 : index
    %141 = vector.load %arg16[%c0_63, %c0_64] : memref<1x128xf32, #tpu.memory_space<vmem>>, vector<1x128xf32>
    %142 = vector.broadcast %141 : vector<1x128xf32> to vector<8x128xf32>
    %143 = arith.addf %140, %142 : vector<8x128xf32>
    %144 = vector.broadcast %28 : vector<8x1xf32> to vector<8x128xf32>
    %145 = arith.mulf %143, %144 : vector<8x128xf32>
    %146 = vector.broadcast %11 : vector<8x1xf32> to vector<8x128xf32>
    %147 = arith.addf %145, %146 : vector<8x128xf32>
    %c0_65 = arith.constant 0 : index
    %c0_66 = arith.constant 0 : index
    %148 = vector.load %arg17[%c0_65, %c0_66] : memref<8x128xf32, #tpu.memory_space<vmem>>, vector<8x128xf32>
    tpu.vector_store %arg17[%c0_65, %c0_66], %147 {strides = array<i32>} : memref<8x128xf32, #tpu.memory_space<vmem>>, vector<8x128xf32>,
    return
  }
  func.func @transform_0(%arg0: i32) -> (i32, i32) {
    %c0_i32 = arith.constant 0 : i32
    %c0_i32_0 = arith.constant 0 : i32
    return %arg0, %c0_i32 : i32, i32
  }
  func.func @transform_1(%arg0: i32) -> (i32, i32) {
    %c0_i32 = arith.constant 0 : i32
    %c0_i32_0 = arith.constant 0 : i32
    return %arg0, %c0_i32 : i32, i32
  }
  func.func @transform_2(%arg0: i32) -> (i32, i32) {
    %c0_i32 = arith.constant 0 : i32
    %c0_i32_0 = arith.constant 0 : i32
    %c0_i32_1 = arith.constant 0 : i32
    return %c0_i32, %c0_i32_0 : i32, i32
  }
  func.func @transform_3(%arg0: i32) -> (i32, i32) {
    %c0_i32 = arith.constant 0 : i32
    %c0_i32_0 = arith.constant 0 : i32
    %c0_i32_1 = arith.constant 0 : i32
    return %c0_i32, %c0_i32_0 : i32, i32
  }
  func.func @transform_4(%arg0: i32) -> (i32, i32) {
    %c0_i32 = arith.constant 0 : i32
    %c0_i32_0 = arith.constant 0 : i32
    %c0_i32_1 = arith.constant 0 : i32
    return %c0_i32, %c0_i32_0 : i32, i32
  }
  func.func @transform_5(%arg0: i32) -> (i32, i32) {
    %c0_i32 = arith.constant 0 : i32
    %c0_i32_0 = arith.constant 0 : i32
    %c0_i32_1 = arith.constant 0 : i32
    return %c0_i32, %c0_i32_0 : i32, i32
  }
  func.func @transform_6(%arg0: i32) -> (i32, i32) {
    %c0_i32 = arith.constant 0 : i32
    %c0_i32_0 = arith.constant 0 : i32
    %c0_i32_1 = arith.constant 0 : i32
    return %c0_i32, %c0_i32_0 : i32, i32
  }
  func.func @transform_7(%arg0: i32) -> (i32, i32) {
    %c0_i32 = arith.constant 0 : i32
    %c0_i32_0 = arith.constant 0 : i32
    %c0_i32_1 = arith.constant 0 : i32
    return %c0_i32, %c0_i32_0 : i32, i32
  }
  func.func @transform_8(%arg0: i32) -> (i32, i32) {
    %c0_i32 = arith.constant 0 : i32
    %c0_i32_0 = arith.constant 0 : i32
    %c0_i32_1 = arith.constant 0 : i32
    return %c0_i32, %c0_i32_0 : i32, i32
  }
  func.func @transform_9(%arg0: i32) -> (i32, i32) {
    %c0_i32 = arith.constant 0 : i32
    %c0_i32_0 = arith.constant 0 : i32
    %c0_i32_1 = arith.constant 0 : i32
    return %c0_i32, %c0_i32_0 : i32, i32
  }
  func.func @transform_10(%arg0: i32) -> (i32, i32) {
    %c0_i32 = arith.constant 0 : i32
    %c0_i32_0 = arith.constant 0 : i32
    %c0_i32_1 = arith.constant 0 : i32
    return %c0_i32, %c0_i32_0 : i32, i32
  }
  func.func @transform_11(%arg0: i32) -> (i32, i32) {
    %c0_i32 = arith.constant 0 : i32
    %c0_i32_0 = arith.constant 0 : i32
    %c0_i32_1 = arith.constant 0 : i32
    return %c0_i32, %c0_i32_0 : i32, i32
  }
  func.func @transform_12(%arg0: i32) -> (i32, i32) {
    %c0_i32 = arith.constant 0 : i32
    %c0_i32_0 = arith.constant 0 : i32
    %c0_i32_1 = arith.constant 0 : i32
    return %c0_i32, %c0_i32_0 : i32, i32
  }
  func.func @transform_13(%arg0: i32) -> (i32, i32) {
    %c0_i32 = arith.constant 0 : i32
    %c0_i32_0 = arith.constant 0 : i32
    %c0_i32_1 = arith.constant 0 : i32
    return %c0_i32, %c0_i32_0 : i32, i32
  }
  func.func @transform_14(%arg0: i32) -> (i32, i32) {
    %c0_i32 = arith.constant 0 : i32
    %c0_i32_0 = arith.constant 0 : i32
    %c0_i32_1 = arith.constant 0 : i32
    return %c0_i32, %c0_i32_0 : i32, i32
  }
  func.func @transform_15(%arg0: i32) -> (i32, i32) {
    %c0_i32 = arith.constant 0 : i32
    %c0_i32_0 = arith.constant 0 : i32
    %c0_i32_1 = arith.constant 0 : i32
    return %c0_i32, %c0_i32_0 : i32, i32
  }
  func.func @transform_16(%arg0: i32) -> (i32, i32) {
    %c0_i32 = arith.constant 0 : i32
    %c0_i32_0 = arith.constant 0 : i32
    return %arg0, %c0_i32 : i32, i32
  }
}

module attributes {stable_mosaic.version = 11 : i64} {
  func.func @kernel(%arg0: i32, %arg1: memref<8x128xf32, #tpu.memory_space<vmem>>, %arg2: memref<8x128xf32, #tpu.memory_space<vmem>>, %arg3: memref<256x128xbf16, #tpu.memory_space<vmem>>, %arg4: memref<1x128xf32, #tpu.memory_space<vmem>>, %arg5: memref<128x128xbf16, #tpu.memory_space<vmem>>, %arg6: memref<1x128xf32, #tpu.memory_space<vmem>>, %arg7: memref<1x128xf32, #tpu.memory_space<vmem>>, %arg8: memref<1x128xf32, #tpu.memory_space<vmem>>, %arg9: memref<1x128xf32, #tpu.memory_space<vmem>>, %arg10: memref<1x128xf32, #tpu.memory_space<vmem>>, %arg11: memref<128x128xbf16, #tpu.memory_space<vmem>>, %arg12: memref<1x128xf32, #tpu.memory_space<vmem>>, %arg13: memref<128x128xbf16, #tpu.memory_space<vmem>>, %arg14: memref<1x128xf32, #tpu.memory_space<vmem>>, %arg15: memref<128x128xbf16, #tpu.memory_space<vmem>>, %arg16: memref<1x128xf32, #tpu.memory_space<vmem>>, %arg17: memref<8x128xf32, #tpu.memory_space<vmem>>) attributes {dimension_semantics = [#tpu.dimension_semantics<parallel>], iteration_bounds = array<i64: 1>, scalar_prefetch = 0 : i64, scratch_operands = 0 : i64, tpu.core_type = #tpu.core_type<tc>, window_params = [{transform_indices = @transform_0, window_bounds = array<i64: 8, 128>}, {transform_indices = @transform_1, window_bounds = array<i64: 8, 128>}, {pipeline_mode = #tpu.pipeline_mode<synchronous>, transform_indices = @transform_2, window_bounds = array<i64: 256, 128>}, {pipeline_mode = #tpu.pipeline_mode<synchronous>, transform_indices = @transform_3, window_bounds = array<i64: 1, 128>}, {pipeline_mode = #tpu.pipeline_mode<synchronous>, transform_indices = @transform_4, window_bounds = array<i64: 128, 128>}, {pipeline_mode = #tpu.pipeline_mode<synchronous>, transform_indices = @transform_5, window_bounds = array<i64: 1, 128>}, {pipeline_mode = #tpu.pipeline_mode<synchronous>, transform_indices = @transform_6, window_bounds = array<i64: 1, 128>}, {pipeline_mode = #tpu.pipeline_mode<synchronous>, transform_indices = @transform_7, window_bounds = array<i64: 1, 128>}, {pipeline_mode = #tpu.pipeline_mode<synchronous>, transform_indices = @transform_8, window_bounds = array<i64: 1, 128>}, {pipeline_mode = #tpu.pipeline_mode<synchronous>, transform_indices = @transform_9, window_bounds = array<i64: 1, 128>}, {pipeline_mode = #tpu.pipeline_mode<synchronous>, transform_indices = @transform_10, window_bounds = array<i64: 128, 128>}, {pipeline_mode = #tpu.pipeline_mode<synchronous>, transform_indices = @transform_11, window_bounds = array<i64: 1, 128>}, {pipeline_mode = #tpu.pipeline_mode<synchronous>, transform_indices = @transform_12, window_bounds = array<i64: 128, 128>}, {pipeline_mode = #tpu.pipeline_mode<synchronous>, transform_indices = @transform_13, window_bounds = array<i64: 1, 128>}, {pipeline_mode = #tpu.pipeline_mode<synchronous>, transform_indices = @transform_14, window_bounds = array<i64: 128, 128>}, {pipeline_mode = #tpu.pipeline_mode<synchronous>, transform_indices = @transform_15, window_bounds = array<i64: 1, 128>}, {transform_indices = @transform_16, window_bounds = array<i64: 8, 128>}]} {
    %c0 = arith.constant 0 : index
    %c0_0 = arith.constant 0 : index
    %0 = vector.load %arg2[%c0, %c0_0] : memref<8x128xf32, #tpu.memory_space<vmem>>, vector<8x128xf32>
    %c0_1 = arith.constant 0 : index
    %c0_2 = arith.constant 0 : index
    %1 = vector.load %arg1[%c0_1, %c0_2] : memref<8x128xf32, #tpu.memory_space<vmem>>, vector<8x128xf32>
    %2 = tpu.iota {dimensions = array<i32: 1>} : vector<1x128xi32>
    %c8_i32 = arith.constant 8 : i32
    %3 = vector.broadcast %c8_i32 : i32 to vector<1x128xi32>
    %4 = arith.cmpi slt, %2, %3 : vector<1x128xi32>
    %5 = tpu.iota {dimensions = array<i32: 1>} : vector<1x128xi32>
    %c16_i32 = arith.constant 16 : i32
    %6 = vector.broadcast %c16_i32 : i32 to vector<1x128xi32>
    %7 = arith.cmpi slt, %5, %6 : vector<1x128xi32>
    %cst = arith.constant dense<0.000000e+00> : vector<8xf32>
    %8 = vector.multi_reduction <add>, %0, %cst [1] : vector<8x128xf32> to vector<8xf32>
    %9 = vector.shape_cast %8 : vector<8xf32> to vector<8x1xf32>
    %cst_3 = arith.constant 1.250000e-01 : f32
    %10 = vector.broadcast %cst_3 : f32 to vector<8x1xf32>
    %11 = arith.mulf %9, %10 : vector<8x1xf32>
    %12 = vector.broadcast %11 : vector<8x1xf32> to vector<8x128xf32>
    %13 = arith.subf %0, %12 : vector<8x128xf32>
    %cst_4 = arith.constant 0.000000e+00 : f32
    %14 = vector.shape_cast %4 : vector<1x128xi1> to vector<1x128xi1>
    %15 = vector.broadcast %14 : vector<1x128xi1> to vector<8x128xi1>
    %16 = vector.broadcast %cst_4 : f32 to vector<8x128xf32>
    %17 = arith.select %15, %13, %16 : vector<8x128xi1>, vector<8x128xf32>
    %18 = arith.mulf %17, %17 : vector<8x128xf32>
    %cst_5 = arith.constant dense<0.000000e+00> : vector<8xf32>
    %19 = vector.multi_reduction <add>, %18, %cst_5 [1] : vector<8x128xf32> to vector<8xf32>
    %20 = vector.shape_cast %19 : vector<8xf32> to vector<8x1xf32>
    %cst_6 = arith.constant 1.250000e-01 : f32
    %21 = vector.broadcast %cst_6 : f32 to vector<8x1xf32>
    %22 = arith.mulf %20, %21 : vector<8x1xf32>
    %cst_7 = arith.constant 9.99999974E-6 : f32
    %23 = vector.broadcast %cst_7 : f32 to vector<8x1xf32>
    %24 = arith.addf %22, %23 : vector<8x1xf32>
    %25 = math.rsqrt %24 : vector<8x1xf32>
    %cst_8 = arith.constant 9.99999974E-6 : f32
    %26 = vector.broadcast %cst_8 : f32 to vector<8x1xf32>
    %27 = arith.addf %22, %26 : vector<8x1xf32>
    %28 = math.sqrt %27 : vector<8x1xf32>
    %29 = vector.broadcast %25 : vector<8x1xf32> to vector<8x128xf32>
    %30 = arith.mulf %17, %29 : vector<8x128xf32>
    %31 = arith.truncf %30 : vector<8x128xf32> to vector<8x128xbf16>
    %32 = arith.truncf %1 : vector<8x128xf32> to vector<8x128xbf16>
    %33 = tpu.concatenate %31, %32 in 1 : vector<8x128xbf16>, vector<8x128xbf16> -> vector<8x256xbf16>
    %c0_9 = arith.constant 0 : index
    %c0_10 = arith.constant 0 : index
    %34 = vector.load %arg3[%c0_9, %c0_10] : memref<256x128xbf16, #tpu.memory_space<vmem>>, vector<256x128xbf16>
    %cst_11 = arith.constant dense<0.000000e+00> : vector<8x128xf32>
    %35 = tpu.matmul %33, %34, %cst_11 {dimension_numbers = #tpu.dot_dimension_numbers<[1], [0], [0], [1], [0, 0, 1, 1], [], []>} : vector<8x256xbf16>, vector<256x128xbf16>, vector<8x128xf32> -> vector<8x128xf32>
    %c0_12 = arith.constant 0 : index
    %c0_13 = arith.constant 0 : index
    %36 = vector.load %arg4[%c0_12, %c0_13] : memref<1x128xf32, #tpu.memory_space<vmem>>, vector<1x128xf32>
    %37 = vector.broadcast %36 : vector<1x128xf32> to vector<8x128xf32>
    %38 = arith.addf %35, %37 : vector<8x128xf32>
    %c0_14 = arith.constant 0 : index
    %c0_15 = arith.constant 0 : index
    %39 = vector.load %arg5[%c0_14, %c0_15] : memref<128x128xbf16, #tpu.memory_space<vmem>>, vector<128x128xbf16>
    %cst_16 = arith.constant dense<0.000000e+00> : vector<8x128xf32>
    %40 = tpu.matmul %31, %39, %cst_16 {dimension_numbers = #tpu.dot_dimension_numbers<[1], [0], [0], [1], [0, 0, 1, 1], [], []>} : vector<8x128xbf16>, vector<128x128xbf16>, vector<8x128xf32> -> vector<8x128xf32>
    %c0_17 = arith.constant 0 : index
    %c0_18 = arith.constant 0 : index
    %41 = vector.load %arg6[%c0_17, %c0_18] : memref<1x128xf32, #tpu.memory_space<vmem>>, vector<1x128xf32>
    %42 = vector.broadcast %41 : vector<1x128xf32> to vector<8x128xf32>
    %43 = arith.addf %40, %42 : vector<8x128xf32>
    %c0_19 = arith.constant 0 : index
    %c0_20 = arith.constant 0 : index
    %44 = vector.load %arg7[%c0_19, %c0_20] : memref<1x128xf32, #tpu.memory_space<vmem>>, vector<1x128xf32>
    %c0_21 = arith.constant 0 : index
    %c0_22 = arith.constant 0 : index
    %45 = vector.load %arg8[%c0_21, %c0_22] : memref<1x128xf32, #tpu.memory_space<vmem>>, vector<1x128xf32>
    %cst_23 = arith.constant dense<0.000000e+00> : vector<8xf32>
    %46 = vector.multi_reduction <add>, %38, %cst_23 [1] : vector<8x128xf32> to vector<8xf32>
    %47 = vector.shape_cast %46 : vector<8xf32> to vector<8x1xf32>
    %cst_24 = arith.constant 6.250000e-02 : f32
    %48 = vector.broadcast %cst_24 : f32 to vector<8x1xf32>
    %49 = arith.mulf %47, %48 : vector<8x1xf32>
    %50 = vector.broadcast %49 : vector<8x1xf32> to vector<8x128xf32>
    %51 = arith.subf %38, %50 : vector<8x128xf32>
    %cst_25 = arith.constant 0.000000e+00 : f32
    %52 = vector.shape_cast %7 : vector<1x128xi1> to vector<1x128xi1>
    %53 = vector.broadcast %52 : vector<1x128xi1> to vector<8x128xi1>
    %54 = vector.broadcast %cst_25 : f32 to vector<8x128xf32>
    %55 = arith.select %53, %51, %54 : vector<8x128xi1>, vector<8x128xf32>
    %56 = arith.mulf %55, %55 : vector<8x128xf32>
    %cst_26 = arith.constant dense<0.000000e+00> : vector<8xf32>
    %57 = vector.multi_reduction <add>, %56, %cst_26 [1] : vector<8x128xf32> to vector<8xf32>
    %58 = vector.shape_cast %57 : vector<8xf32> to vector<8x1xf32>
    %cst_27 = arith.constant 6.250000e-02 : f32
    %59 = vector.broadcast %cst_27 : f32 to vector<8x1xf32>
    %60 = arith.mulf %58, %59 : vector<8x1xf32>
    %cst_28 = arith.constant 9.99999974E-6 : f32
    %61 = vector.broadcast %cst_28 : f32 to vector<8x1xf32>
    %62 = arith.addf %60, %61 : vector<8x1xf32>
    %63 = math.rsqrt %62 : vector<8x1xf32>
    %64 = vector.broadcast %63 : vector<8x1xf32> to vector<8x128xf32>
    %65 = arith.mulf %55, %64 : vector<8x128xf32>
    %66 = vector.broadcast %44 : vector<1x128xf32> to vector<8x128xf32>
    %67 = arith.mulf %65, %66 : vector<8x128xf32>
    %68 = vector.broadcast %45 : vector<1x128xf32> to vector<8x128xf32>
    %69 = arith.addf %67, %68 : vector<8x128xf32>
    %70 = arith.addf %43, %69 : vector<8x128xf32>
    %c0_29 = arith.constant 0 : index
    %c0_30 = arith.constant 0 : index
    %71 = vector.load %arg9[%c0_29, %c0_30] : memref<1x128xf32, #tpu.memory_space<vmem>>, vector<1x128xf32>
    %c0_31 = arith.constant 0 : index
    %c0_32 = arith.constant 0 : index
    %72 = vector.load %arg10[%c0_31, %c0_32] : memref<1x128xf32, #tpu.memory_space<vmem>>, vector<1x128xf32>
    %cst_33 = arith.constant dense<0.000000e+00> : vector<8xf32>
    %73 = vector.multi_reduction <add>, %70, %cst_33 [1] : vector<8x128xf32> to vector<8xf32>
    %74 = vector.shape_cast %73 : vector<8xf32> to vector<8x1xf32>
    %cst_34 = arith.constant 6.250000e-02 : f32
    %75 = vector.broadcast %cst_34 : f32 to vector<8x1xf32>
    %76 = arith.mulf %74, %75 : vector<8x1xf32>
    %77 = vector.broadcast %76 : vector<8x1xf32> to vector<8x128xf32>
    %78 = arith.subf %70, %77 : vector<8x128xf32>
    %cst_35 = arith.constant 0.000000e+00 : f32
    %79 = vector.shape_cast %7 : vector<1x128xi1> to vector<1x128xi1>
    %80 = vector.broadcast %79 : vector<1x128xi1> to vector<8x128xi1>
    %81 = vector.broadcast %cst_35 : f32 to vector<8x128xf32>
    %82 = arith.select %80, %78, %81 : vector<8x128xi1>, vector<8x128xf32>
    %83 = arith.mulf %82, %82 : vector<8x128xf32>
    %cst_36 = arith.constant dense<0.000000e+00> : vector<8xf32>
    %84 = vector.multi_reduction <add>, %83, %cst_36 [1] : vector<8x128xf32> to vector<8xf32>
    %85 = vector.shape_cast %84 : vector<8xf32> to vector<8x1xf32>
    %cst_37 = arith.constant 6.250000e-02 : f32
    %86 = vector.broadcast %cst_37 : f32 to vector<8x1xf32>
    %87 = arith.mulf %85, %86 : vector<8x1xf32>
    %cst_38 = arith.constant 9.99999974E-6 : f32
    %88 = vector.broadcast %cst_38 : f32 to vector<8x1xf32>
    %89 = arith.addf %87, %88 : vector<8x1xf32>
    %90 = math.rsqrt %89 : vector<8x1xf32>
    %91 = vector.broadcast %90 : vector<8x1xf32> to vector<8x128xf32>
    %92 = arith.mulf %82, %91 : vector<8x128xf32>
    %93 = vector.broadcast %71 : vector<1x128xf32> to vector<8x128xf32>
    %94 = arith.mulf %92, %93 : vector<8x128xf32>
    %95 = vector.broadcast %72 : vector<1x128xf32> to vector<8x128xf32>
    %96 = arith.addf %94, %95 : vector<8x128xf32>
    %97 = arith.truncf %96 : vector<8x128xf32> to vector<8x128xbf16>
    %c0_39 = arith.constant 0 : index
    %c0_40 = arith.constant 0 : index
    %98 = vector.load %arg11[%c0_39, %c0_40] : memref<128x128xbf16, #tpu.memory_space<vmem>>, vector<128x128xbf16>
    %cst_41 = arith.constant dense<0.000000e+00> : vector<8x128xf32>
    %99 = tpu.matmul %97, %98, %cst_41 {dimension_numbers = #tpu.dot_dimension_numbers<[1], [0], [0], [1], [0, 0, 1, 1], [], []>} : vector<8x128xbf16>, vector<128x128xbf16>, vector<8x128xf32> -> vector<8x128xf32>
    %c0_42 = arith.constant 0 : index
    %c0_43 = arith.constant 0 : index
    %100 = vector.load %arg12[%c0_42, %c0_43] : memref<1x128xf32, #tpu.memory_space<vmem>>, vector<1x128xf32>
    %101 = vector.broadcast %100 : vector<1x128xf32> to vector<8x128xf32>
    %102 = arith.addf %99, %101 : vector<8x128xf32>
    %cst_44 = arith.constant 0.000000e+00 : f32
    %103 = vector.broadcast %cst_44 : f32 to vector<8x128xf32>
    %104 = arith.maximumf %102, %103 : vector<8x128xf32>
    %105 = arith.truncf %104 : vector<8x128xf32> to vector<8x128xbf16>
    %c0_45 = arith.constant 0 : index
    %c0_46 = arith.constant 0 : index
    %106 = vector.load %arg13[%c0_45, %c0_46] : memref<128x128xbf16, #tpu.memory_space<vmem>>, vector<128x128xbf16>
    %cst_47 = arith.constant dense<0.000000e+00> : vector<8x128xf32>
    %107 = tpu.matmul %105, %106, %cst_47 {dimension_numbers = #tpu.dot_dimension_numbers<[1], [0], [0], [1], [0, 0, 1, 1], [], []>} : vector<8x128xbf16>, vector<128x128xbf16>, vector<8x128xf32> -> vector<8x128xf32>
    %c0_48 = arith.constant 0 : index
    %c0_49 = arith.constant 0 : index
    %108 = vector.load %arg14[%c0_48, %c0_49] : memref<1x128xf32, #tpu.memory_space<vmem>>, vector<1x128xf32>
    %109 = vector.broadcast %108 : vector<1x128xf32> to vector<8x128xf32>
    %110 = arith.addf %107, %109 : vector<8x128xf32>
    %111 = arith.addf %110, %96 : vector<8x128xf32>
    %c0_50 = arith.constant 0 : index
    %c0_51 = arith.constant 0 : index
    %112 = vector.load %arg9[%c0_50, %c0_51] : memref<1x128xf32, #tpu.memory_space<vmem>>, vector<1x128xf32>
    %c0_52 = arith.constant 0 : index
    %c0_53 = arith.constant 0 : index
    %113 = vector.load %arg10[%c0_52, %c0_53] : memref<1x128xf32, #tpu.memory_space<vmem>>, vector<1x128xf32>
    %cst_54 = arith.constant dense<0.000000e+00> : vector<8xf32>
    %114 = vector.multi_reduction <add>, %111, %cst_54 [1] : vector<8x128xf32> to vector<8xf32>
    %115 = vector.shape_cast %114 : vector<8xf32> to vector<8x1xf32>
    %cst_55 = arith.constant 6.250000e-02 : f32
    %116 = vector.broadcast %cst_55 : f32 to vector<8x1xf32>
    %117 = arith.mulf %115, %116 : vector<8x1xf32>
    %118 = vector.broadcast %117 : vector<8x1xf32> to vector<8x128xf32>
    %119 = arith.subf %111, %118 : vector<8x128xf32>
    %cst_56 = arith.constant 0.000000e+00 : f32
    %120 = vector.shape_cast %7 : vector<1x128xi1> to vector<1x128xi1>
    %121 = vector.broadcast %120 : vector<1x128xi1> to vector<8x128xi1>
    %122 = vector.broadcast %cst_56 : f32 to vector<8x128xf32>
    %123 = arith.select %121, %119, %122 : vector<8x128xi1>, vector<8x128xf32>
    %124 = arith.mulf %123, %123 : vector<8x128xf32>
    %cst_57 = arith.constant dense<0.000000e+00> : vector<8xf32>
    %125 = vector.multi_reduction <add>, %124, %cst_57 [1] : vector<8x128xf32> to vector<8xf32>
    %126 = vector.shape_cast %125 : vector<8xf32> to vector<8x1xf32>
    %cst_58 = arith.constant 6.250000e-02 : f32
    %127 = vector.broadcast %cst_58 : f32 to vector<8x1xf32>
    %128 = arith.mulf %126, %127 : vector<8x1xf32>
    %cst_59 = arith.constant 9.99999974E-6 : f32
    %129 = vector.broadcast %cst_59 : f32 to vector<8x1xf32>
    %130 = arith.addf %128, %129 : vector<8x1xf32>
    %131 = math.rsqrt %130 : vector<8x1xf32>
    %132 = vector.broadcast %131 : vector<8x1xf32> to vector<8x128xf32>
    %133 = arith.mulf %123, %132 : vector<8x128xf32>
    %134 = vector.broadcast %112 : vector<1x128xf32> to vector<8x128xf32>
    %135 = arith.mulf %133, %134 : vector<8x128xf32>
    %136 = vector.broadcast %113 : vector<1x128xf32> to vector<8x128xf32>
    %137 = arith.addf %135, %136 : vector<8x128xf32>
    %138 = arith.truncf %137 : vector<8x128xf32> to vector<8x128xbf16>
    %c0_60 = arith.constant 0 : index
    %c0_61 = arith.constant 0 : index
    %139 = vector.load %arg15[%c0_60, %c0_61] : memref<128x128xbf16, #tpu.memory_space<vmem>>, vector<128x128xbf16>
    %cst_62 = arith.constant dense<0.000000e+00> : vector<8x128xf32>
    %140 = tpu.matmul %138, %139, %cst_62 {dimension_numbers = #tpu.dot_dimension_numbers<[1], [0], [0], [1], [0, 0, 1, 1], [], []>} : vector<8x128xbf16>, vector<128x128xbf16>, vector<8x128xf32> -> vector<8x128xf32>
    %c0_63 = arith.constant 0 : index
    %c0_64 = arith.constant 0 : index
    %141 = vector.load %arg16[%c0_63, %c0_64] : memref<1x128xf32, #tpu.memory_space<vmem>>, vector<1x128xf32>
    %142 = vector.broadcast %141 : vector<1x128xf32> to vector<8x128xf32>
    %143 = arith.addf %140, %142 : vector<8x128xf32>
    %144 = vector.broadcast %28 : vector<8x1xf32> to vector<8x128xf32>
    %145 = arith.mulf %143, %144 : vector<8x128xf32>
    %146 = vector.broadcast %11 : vector<8x1xf32> to vector<8x128xf32>
    %147 = arith.addf %145, %146 : vector<8x128xf32>
    %c0_65 = arith.constant 0 : index
    %c0_66 = arith.constant 0 : index
    %148 = vector.load %arg17[%c0_65, %c0_66] : memref<8x128xf32, #tpu.memory_space<vmem>>, vector<8x128xf32>
    tpu.vector_store %arg17[%c0_65, %c0_66], %147 {strides = array<i32>} : memref<8x128xf32, #tpu.memory_space<vmem>>, vector<8x128xf32>,
    return
  }
  func.func @transform_0(%arg0: i32) -> (i32, i32) {
    %c0_i32 = arith.constant 0 : i32
    %c0_i32_0 = arith.constant 0 : i32
    return %arg0, %c0_i32 : i32, i32
  }
  func.func @transform_1(%arg0: i32) -> (i32, i32) {
    %c0_i32 = arith.constant 0 : i32
    %c0_i32_0 = arith.constant 0 : i32
    return %arg0, %c0_i32 : i32, i32
  }
  func.func @transform_2(%arg0: i32) -> (i32, i32) {
    %c0_i32 = arith.constant 0 : i32
    %c0_i32_0 = arith.constant 0 : i32
    %c0_i32_1 = arith.constant 0 : i32
    return %c0_i32, %c0_i32_0 : i32, i32
  }
  func.func @transform_3(%arg0: i32) -> (i32, i32) {
    %c0_i32 = arith.constant 0 : i32
    %c0_i32_0 = arith.constant 0 : i32
    %c0_i32_1 = arith.constant 0 : i32
    return %c0_i32, %c0_i32_0 : i32, i32
  }
  func.func @transform_4(%arg0: i32) -> (i32, i32) {
    %c0_i32 = arith.constant 0 : i32
    %c0_i32_0 = arith.constant 0 : i32
    %c0_i32_1 = arith.constant 0 : i32
    return %c0_i32, %c0_i32_0 : i32, i32
  }
  func.func @transform_5(%arg0: i32) -> (i32, i32) {
    %c0_i32 = arith.constant 0 : i32
    %c0_i32_0 = arith.constant 0 : i32
    %c0_i32_1 = arith.constant 0 : i32
    return %c0_i32, %c0_i32_0 : i32, i32
  }
  func.func @transform_6(%arg0: i32) -> (i32, i32) {
    %c0_i32 = arith.constant 0 : i32
    %c0_i32_0 = arith.constant 0 : i32
    %c0_i32_1 = arith.constant 0 : i32
    return %c0_i32, %c0_i32_0 : i32, i32
  }
  func.func @transform_7(%arg0: i32) -> (i32, i32) {
    %c0_i32 = arith.constant 0 : i32
    %c0_i32_0 = arith.constant 0 : i32
    %c0_i32_1 = arith.constant 0 : i32
    return %c0_i32, %c0_i32_0 : i32, i32
  }
  func.func @transform_8(%arg0: i32) -> (i32, i32) {
    %c0_i32 = arith.constant 0 : i32
    %c0_i32_0 = arith.constant 0 : i32
    %c0_i32_1 = arith.constant 0 : i32
    return %c0_i32, %c0_i32_0 : i32, i32
  }
  func.func @transform_9(%arg0: i32) -> (i32, i32) {
    %c0_i32 = arith.constant 0 : i32
    %c0_i32_0 = arith.constant 0 : i32
    %c0_i32_1 = arith.constant 0 : i32
    return %c0_i32, %c0_i32_0 : i32, i32
  }
  func.func @transform_10(%arg0: i32) -> (i32, i32) {
    %c0_i32 = arith.constant 0 : i32
    %c0_i32_0 = arith.constant 0 : i32
    %c0_i32_1 = arith.constant 0 : i32
    return %c0_i32, %c0_i32_0 : i32, i32
  }
  func.func @transform_11(%arg0: i32) -> (i32, i32) {
    %c0_i32 = arith.constant 0 : i32
    %c0_i32_0 = arith.constant 0 : i32
    %c0_i32_1 = arith.constant 0 : i32
    return %c0_i32, %c0_i32_0 : i32, i32
  }
  func.func @transform_12(%arg0: i32) -> (i32, i32) {
    %c0_i32 = arith.constant 0 : i32
    %c0_i32_0 = arith.constant 0 : i32
    %c0_i32_1 = arith.constant 0 : i32
    return %c0_i32, %c0_i32_0 : i32, i32
  }
  func.func @transform_13(%arg0: i32) -> (i32, i32) {
    %c0_i32 = arith.constant 0 : i32
    %c0_i32_0 = arith.constant 0 : i32
    %c0_i32_1 = arith.constant 0 : i32
    return %c0_i32, %c0_i32_0 : i32, i32
  }
  func.func @transform_14(%arg0: i32) -> (i32, i32) {
    %c0_i32 = arith.constant 0 : i32
    %c0_i32_0 = arith.constant 0 : i32
    %c0_i32_1 = arith.constant 0 : i32
    return %c0_i32, %c0_i32_0 : i32, i32
  }
  func.func @transform_15(%arg0: i32) -> (i32, i32) {
    %c0_i32 = arith.constant 0 : i32
    %c0_i32_0 = arith.constant 0 : i32
    %c0_i32_1 = arith.constant 0 : i32
    return %c0_i32, %c0_i32_0 : i32, i32
  }
  func.func @transform_16(%arg0: i32) -> (i32, i32) {
    %c0_i32 = arith.constant 0 : i32
    %c0_i32_0 = arith.constant 0 : i32
    return %arg0, %c0_i32 : i32, i32
  }
}

</mosaic_0001>

<llo_original>
// kernel: tpu_custom_call.1
$region0: #{tpu_custom_call.1}
  #allocation0 [shape = 'u32[]', space=smem, size = 0x4, offset = 0x4, fixed_abs, tag = 'smem constant byte address 0x4 - core index']
  #allocation1 [shape = 'u32[144,128]{1,0:T(1,128)}', space=vmem, size = 0x12000, scoped, tag = 'internal scratch']
  %s0 = inlined_call_operand.hbm [shape: f32[8,128], index: 0, kind: input, shape index: {}]
  %s1 = inlined_call_operand.hbm [shape: f32[8,128], index: 1, kind: input, shape index: {}]
  %s2 = inlined_call_operand.hbm [shape: bf16[256,128], index: 2, kind: input, shape index: {}]
  %s3 = inlined_call_operand.vmem [shape: f32[1,128], index: 3, kind: input, shape index: {}]
  %s4 = inlined_call_operand.hbm [shape: bf16[128,128], index: 4, kind: input, shape index: {}]
  %s5 = inlined_call_operand.vmem [shape: f32[1,128], index: 5, kind: input, shape index: {}]
  %s6 = inlined_call_operand.vmem [shape: f32[1,128], index: 6, kind: input, shape index: {}]
  %s7 = inlined_call_operand.vmem [shape: f32[1,128], index: 7, kind: input, shape index: {}]
  %s8 = inlined_call_operand.vmem [shape: f32[1,128], index: 8, kind: input, shape index: {}]
  %s9 = inlined_call_operand.vmem [shape: f32[1,128], index: 9, kind: input, shape index: {}]
  %s10 = inlined_call_operand.hbm [shape: bf16[128,128], index: 10, kind: input, shape index: {}]
  %s11 = inlined_call_operand.vmem [shape: f32[1,128], index: 11, kind: input, shape index: {}]
  %s12 = inlined_call_operand.hbm [shape: bf16[128,128], index: 12, kind: input, shape index: {}]
  %s13 = inlined_call_operand.vmem [shape: f32[1,128], index: 13, kind: input, shape index: {}]
  %s14 = inlined_call_operand.hbm [shape: bf16[128,128], index: 14, kind: input, shape index: {}]
  %s15 = inlined_call_operand.vmem [shape: f32[1,128], index: 15, kind: input, shape index: {}]
  %s16 = inlined_call_operand.hbm [shape: f32[8,128], index: 16, kind: output, shape index: {}]
  %s17 = sld [smem:[#allocation0]]
  $region102: #{tpu_custom_call.1} parent=0
    _
  %s19 = ssub.s32 1, %s17
  %s20 = scalar_select 0, %s19, %s17
  $region1: #{tpu_custom_call.1} parent=0
    #allocation2 [shape = 'u8[4096]{0}', space=vmem, size = 0x1000, scoped, tag = 'input window, operand 0, single buffered']
    #allocation3 [shape = 's32[1]{0}', space=sflag, size = 0x4, scoped, tag = 'scoped memory for tpu_custom_call.1']
    #allocation4 [shape = 's32[1]{0}', space=sflag, size = 0x4, scoped, tag = 'scoped memory for tpu_custom_call.1']
    #allocation5 [shape = 'u8[4096]{0}', space=vmem, size = 0x1000, scoped, tag = 'input window, operand 1, single buffered']
    #allocation6 [shape = 's32[1]{0}', space=sflag, size = 0x4, scoped, tag = 'scoped memory for tpu_custom_call.1']
    #allocation7 [shape = 'u8[65536]{0}', space=vmem, size = 0x10000, scoped, tag = 'input window, operand 2, single buffered']
    #allocation8 [shape = 'u8[32768]{0}', space=vmem, size = 0x8000, scoped, tag = 'input window, operand 4, single buffered']
    #allocation9 [shape = 's32[1]{0}', space=sflag, size = 0x4, scoped, tag = 'scoped memory for tpu_custom_call.1']
    #allocation10 [shape = 'u8[32768]{0}', space=vmem, size = 0x8000, scoped, tag = 'input window, operand 10, single buffered']
    #allocation11 [shape = 'u8[32768]{0}', space=vmem, size = 0x8000, scoped, tag = 'input window, operand 12, single buffered']
    #allocation12 [shape = 's32[1]{0}', space=sflag, size = 0x4, scoped, tag = 'scoped memory for tpu_custom_call.1']
    #allocation13 [shape = 'u8[32768]{0}', space=vmem, size = 0x8000, scoped, tag = 'input window, operand 14, single buffered']
    #allocation14 [shape = 'u8[4096]{0}', space=vmem, size = 0x1000, scoped, tag = 'output window, operand 0, single buffered']
    %21 = vsyncpa [#allocation3], 0
    %22 = vsyncpa [#allocation6], 0
    %23 = vsyncpa [#allocation9], 0
    %24 = vsyncpa [#allocation12], 0
    %25 = vsyncpa [#allocation4], 0
    // Predicated region
    $region2: #{tpu_custom_call.1} parent=1 // pred_check
      _
    $region3: #{tpu_custom_call.1} parent=1 // pred_check_branch
      %27 = sbr.rel (0) target = $region5
    $region4: #{tpu_custom_call.1} parent=1 // pred_region
      %s29 = ssub.s32 128, 128
      %30 = vsyncadd [#allocation3], %s29
      %s32 = sshll.u32 [#allocation2], 4
      %s33 = int_to_ptr.vmem [resolvable:$true] %s32
      %35 = dma.hbm_to_vmem [thread:$0]  %s0, 128, %s33, [#allocation3]
    $region5: #{tpu_custom_call.1} parent=1 // pred_fallthru
      _
    // Predicated region
    $region6: #{tpu_custom_call.1} parent=1 // pred_check
      _
    $region7: #{tpu_custom_call.1} parent=1 // pred_check_branch
      %37 = sbr.rel (0) target = $region9
    $region8: #{tpu_custom_call.1} parent=1 // pred_region
      %s39 = ssub.s32 128, 128
      %40 = vsyncadd [#allocation6], %s39
      %s42 = sshll.u32 [#allocation5], 4
      %s43 = int_to_ptr.vmem [resolvable:$true] %s42
      %45 = dma.hbm_to_vmem [thread:$0]  %s1, 128, %s43, [#allocation6]
    $region9: #{tpu_custom_call.1} parent=1 // pred_fallthru
      _
    // Predicated region
    $region10: #{tpu_custom_call.1} parent=1 // pred_check
      _
    $region11: #{tpu_custom_call.1} parent=1 // pred_check_branch
      %47 = sbr.rel (0) target = $region13
    $region12: #{tpu_custom_call.1} parent=1 // pred_region
      %s49 = ssub.s32 2048, 2048
      %50 = vsyncadd [#allocation6], %s49
      %s51 = sshll.u32 [#allocation7], 4
      %s52 = int_to_ptr.vmem [resolvable:$true] %s51
      %57 = dma.hbm_to_vmem [thread:$0]  %s2, 2048, %s52, [#allocation6], 64, 64, 4
    $region13: #{tpu_custom_call.1} parent=1 // pred_fallthru
      _
    // Predicated region
    $region14: #{tpu_custom_call.1} parent=1 // pred_check
      _
    $region15: #{tpu_custom_call.1} parent=1 // pred_check_branch
      %59 = sbr.rel (0) target = $region17
    $region16: #{tpu_custom_call.1} parent=1 // pred_region
      _
    $region17: #{tpu_custom_call.1} parent=1 // pred_fallthru
      _
    // Predicated region
    $region18: #{tpu_custom_call.1} parent=1 // pred_check
      _
    $region19: #{tpu_custom_call.1} parent=1 // pred_check_branch
      %61 = sbr.rel (0) target = $region21
    $region20: #{tpu_custom_call.1} parent=1 // pred_region
      %s63 = ssub.s32 1024, 1024
      %64 = vsyncadd [#allocation9], %s63
      %s65 = sshll.u32 [#allocation8], 4
      %s66 = int_to_ptr.vmem [resolvable:$true] %s65
      %71 = dma.hbm_to_vmem [thread:$0]  %s4, 1024, %s66, [#allocation9], 64, 64, 4
    $region21: #{tpu_custom_call.1} parent=1 // pred_fallthru
      _
    // Predicated region
    $region22: #{tpu_custom_call.1} parent=1 // pred_check
      _
    $region23: #{tpu_custom_call.1} parent=1 // pred_check_branch
      %73 = sbr.rel (0) target = $region25
    $region24: #{tpu_custom_call.1} parent=1 // pred_region
      _
    $region25: #{tpu_custom_call.1} parent=1 // pred_fallthru
      _
    // Predicated region
    $region26: #{tpu_custom_call.1} parent=1 // pred_check
      _
    $region27: #{tpu_custom_call.1} parent=1 // pred_check_branch
      %75 = sbr.rel (0) target = $region29
    $region28: #{tpu_custom_call.1} parent=1 // pred_region
      _
    $region29: #{tpu_custom_call.1} parent=1 // pred_fallthru
      _
    // Predicated region
    $region30: #{tpu_custom_call.1} parent=1 // pred_check
      _
    $region31: #{tpu_custom_call.1} parent=1 // pred_check_branch
      %77 = sbr.rel (0) target = $region33
    $region32: #{tpu_custom_call.1} parent=1 // pred_region
      _
    $region33: #{tpu_custom_call.1} parent=1 // pred_fallthru
      _
    // Predicated region
    $region34: #{tpu_custom_call.1} parent=1 // pred_check
      _
    $region35: #{tpu_custom_call.1} parent=1 // pred_check_branch
      %79 = sbr.rel (0) target = $region37
    $region36: #{tpu_custom_call.1} parent=1 // pred_region
      _
    $region37: #{tpu_custom_call.1} parent=1 // pred_fallthru
      _
    // Predicated region
    $region38: #{tpu_custom_call.1} parent=1 // pred_check
      _
    $region39: #{tpu_custom_call.1} parent=1 // pred_check_branch
      %81 = sbr.rel (0) target = $region41
    $region40: #{tpu_custom_call.1} parent=1 // pred_region
      _
    $region41: #{tpu_custom_call.1} parent=1 // pred_fallthru
      _
    // Predicated region
    $region42: #{tpu_custom_call.1} parent=1 // pred_check
      _
    $region43: #{tpu_custom_call.1} parent=1 // pred_check_branch
      %83 = sbr.rel (0) target = $region45
    $region44: #{tpu_custom_call.1} parent=1 // pred_region
      %s85 = ssub.s32 1024, 1024
      %86 = vsyncadd [#allocation9], %s85
      %s87 = sshll.u32 [#allocation10], 4
      %s88 = int_to_ptr.vmem [resolvable:$true] %s87
      %93 = dma.hbm_to_vmem [thread:$0]  %s10, 1024, %s88, [#allocation9], 64, 64, 4
    $region45: #{tpu_custom_call.1} parent=1 // pred_fallthru
      _
    // Predicated region
    $region46: #{tpu_custom_call.1} parent=1 // pred_check
      _
    $region47: #{tpu_custom_call.1} parent=1 // pred_check_branch
      %95 = sbr.rel (0) target = $region49
    $region48: #{tpu_custom_call.1} parent=1 // pred_region
      _
    $region49: #{tpu_custom_call.1} parent=1 // pred_fallthru
      _
    // Predicated region
    $region50: #{tpu_custom_call.1} parent=1 // pred_check
      _
    $region51: #{tpu_custom_call.1} parent=1 // pred_check_branch
      %97 = sbr.rel (0) target = $region53
    $region52: #{tpu_custom_call.1} parent=1 // pred_region
      %s99 = ssub.s32 1024, 1024
      %100 = vsyncadd [#allocation12], %s99
      %s101 = sshll.u32 [#allocation11], 4
      %s102 = int_to_ptr.vmem [resolvable:$true] %s101
      %107 = dma.hbm_to_vmem [thread:$0]  %s12, 1024, %s102, [#allocation12], 64, 64, 4
    $region53: #{tpu_custom_call.1} parent=1 // pred_fallthru
      _
    // Predicated region
    $region54: #{tpu_custom_call.1} parent=1 // pred_check
      _
    $region55: #{tpu_custom_call.1} parent=1 // pred_check_branch
      %109 = sbr.rel (0) target = $region57
    $region56: #{tpu_custom_call.1} parent=1 // pred_region
      _
    $region57: #{tpu_custom_call.1} parent=1 // pred_fallthru
      _
    // Predicated region
    $region58: #{tpu_custom_call.1} parent=1 // pred_check
      _
    $region59: #{tpu_custom_call.1} parent=1 // pred_check_branch
      %111 = sbr.rel (0) target = $region61
    $region60: #{tpu_custom_call.1} parent=1 // pred_region
      %s113 = ssub.s32 1024, 1024
      %114 = vsyncadd [#allocation12], %s113
      %s115 = sshll.u32 [#allocation13], 4
      %s116 = int_to_ptr.vmem [resolvable:$true] %s115
      %121 = dma.hbm_to_vmem [thread:$0]  %s14, 1024, %s116, [#allocation12], 64, 64, 4
    $region61: #{tpu_custom_call.1} parent=1 // pred_fallthru
      _
    // Predicated region
    $region62: #{tpu_custom_call.1} parent=1 // pred_check
      _
    $region63: #{tpu_custom_call.1} parent=1 // pred_check_branch
      %123 = sbr.rel (0) target = $region65
    $region64: #{tpu_custom_call.1} parent=1 // pred_region
      _
    $region65: #{tpu_custom_call.1} parent=1 // pred_fallthru
      _
    // Predicated region
    $region66: #{tpu_custom_call.1} parent=1 // pred_check
      _
    $region67: #{tpu_custom_call.1} parent=1 // pred_check_branch
      %125 = sbr.rel (0) target = $region69
    $region68: #{tpu_custom_call.1} parent=1 // pred_region
      %126 = dma.done [#allocation3], 128
    $region69: #{tpu_custom_call.1} parent=1 // pred_fallthru
      _
    // Predicated region
    $region70: #{tpu_custom_call.1} parent=1 // pred_check
      _
    $region71: #{tpu_custom_call.1} parent=1 // pred_check_branch
      %128 = sbr.rel (0) target = $region73
    $region72: #{tpu_custom_call.1} parent=1 // pred_region
      %129 = dma.done [#allocation6], 128
    $region73: #{tpu_custom_call.1} parent=1 // pred_fallthru
      _
    // Predicated region
    $region74: #{tpu_custom_call.1} parent=1 // pred_check
      _
    $region75: #{tpu_custom_call.1} parent=1 // pred_check_branch
      %131 = sbr.rel (0) target = $region77
    $region76: #{tpu_custom_call.1} parent=1 // pred_region
      %132 = dma.done [#allocation6], 2048
    $region77: #{tpu_custom_call.1} parent=1 // pred_fallthru
      _
    // Predicated region
    $region78: #{tpu_custom_call.1} parent=1 // pred_check
      _
    $region79: #{tpu_custom_call.1} parent=1 // pred_check_branch
      %134 = sbr.rel (0) target = $region81
    $region80: #{tpu_custom_call.1} parent=1 // pred_region
      %135 = dma.done [#allocation9], 1024
    $region81: #{tpu_custom_call.1} parent=1 // pred_fallthru
      _
    // Predicated region
    $region82: #{tpu_custom_call.1} parent=1 // pred_check
      _
    $region83: #{tpu_custom_call.1} parent=1 // pred_check_branch
      %137 = sbr.rel (0) target = $region85
    $region84: #{tpu_custom_call.1} parent=1 // pred_region
      %138 = dma.done [#allocation9], 1024
    $region85: #{tpu_custom_call.1} parent=1 // pred_fallthru
      _
    // Predicated region
    $region86: #{tpu_custom_call.1} parent=1 // pred_check
      _
    $region87: #{tpu_custom_call.1} parent=1 // pred_check_branch
      %140 = sbr.rel (0) target = $region89
    $region88: #{tpu_custom_call.1} parent=1 // pred_region
      %141 = dma.done [#allocation12], 1024
    $region89: #{tpu_custom_call.1} parent=1 // pred_fallthru
      _
    // Predicated region
    $region90: #{tpu_custom_call.1} parent=1 // pred_check
      _
    $region91: #{tpu_custom_call.1} parent=1 // pred_check_branch
      %143 = sbr.rel (0) target = $region93
    $region92: #{tpu_custom_call.1} parent=1 // pred_region
      %144 = dma.done [#allocation12], 1024
    $region93: #{tpu_custom_call.1} parent=1 // pred_fallthru
      _
    %v146 = vld [vmem:[#allocation5] sm:$0xff]
    %v147 = vld [vmem:[#allocation2] sm:$0xff]
    %v148 = vlaneseq
    %v149 = vand.u32 %v148, 127
    %vm150 = vcmp.lt.s32.totalorder %v149, 8
    %vm151 = vcmp.lt.s32.totalorder %v149, 16
    %152 = vadd.xlane.f32.xlu0 %v146
    %v153 = vpop.xlane.xlu0 %152
    %v154 = vmul.f32 %v153, 0.125
    %v155 = vsub.f32 %v146, %v154
    %v156 = vsel %vm150, 1, 0
    %vm157 = vcmp.eq.s32.totalorder %v156, 1
    %v158 = vsel %vm157, %v155, 0.0
    %v159 = vmul.f32 %v158, %v158
    %160 = vadd.xlane.f32.xlu0 %v159
    %v161 = vpop.xlane.xlu0 %160
    %v162 = vmul.f32 %v161, 0.125
    %v163 = vadd.f32 %v162, 1e-05
    %v164 = vrsqrt.pop %v163
    %v165 = vrsqrt.pop %v163
    %v166 = vmul.f32 %v163, %v165
    %vm167 = vcmp.eq.f32.partialorder %v163, inf
    %v168 = vsel %vm167, %v163, %v166
    %vm169 = vcmp.eq.f32.partialorder %v163, 0.0
    %v170 = vand.u32 %v163, 2147483648
    %v171 = vsel %vm169, %v170, %v168
    %v172 = vmul.f32 %v158, %v164
    %v173 = vpack.c.bf16 %v172, %v172
    %v174 = vpack.c.bf16 %v147, %v147
    %v175 = vld [vmem:[#allocation7] sm:$0xf]
    %v176 = vld [vmem:[#allocation7 + $0x4] sm:$0xf]
    %v177 = vld [vmem:[#allocation7 + $0x8] sm:$0xf]
    %v178 = vld [vmem:[#allocation7 + $0xc] sm:$0xf]
    %v179 = vld [vmem:[#allocation7 + $0x10] sm:$0xf]
    %v180 = vld [vmem:[#allocation7 + $0x14] sm:$0xf]
    %v181 = vld [vmem:[#allocation7 + $0x18] sm:$0xf]
    %v182 = vld [vmem:[#allocation7 + $0x1c] sm:$0xf]
    %v183 = vld [vmem:[#allocation7 + $0x20] sm:$0xf]
    %v184 = vld [vmem:[#allocation7 + $0x24] sm:$0xf]
    %v185 = vld [vmem:[#allocation7 + $0x28] sm:$0xf]
    %v186 = vld [vmem:[#allocation7 + $0x2c] sm:$0xf]
    %v187 = vld [vmem:[#allocation7 + $0x30] sm:$0xf]
    %v188 = vld [vmem:[#allocation7 + $0x34] sm:$0xf]
    %v189 = vld [vmem:[#allocation7 + $0x38] sm:$0xf]
    %v190 = vld [vmem:[#allocation7 + $0x3c] sm:$0xf]
    %v191 = vld [vmem:[#allocation7 + $0x40] sm:$0xf]
    %v192 = vld [vmem:[#allocation7 + $0x44] sm:$0xf]
    %v193 = vld [vmem:[#allocation7 + $0x48] sm:$0xf]
    %v194 = vld [vmem:[#allocation7 + $0x4c] sm:$0xf]
    %v195 = vld [vmem:[#allocation7 + $0x50] sm:$0xf]
    %v196 = vld [vmem:[#allocation7 + $0x54] sm:$0xf]
    %v197 = vld [vmem:[#allocation7 + $0x58] sm:$0xf]
    %v198 = vld [vmem:[#allocation7 + $0x5c] sm:$0xf]
    %v199 = vld [vmem:[#allocation7 + $0x60] sm:$0xf]
    %v200 = vld [vmem:[#allocation7 + $0x64] sm:$0xf]
    %v201 = vld [vmem:[#allocation7 + $0x68] sm:$0xf]
    %v202 = vld [vmem:[#allocation7 + $0x6c] sm:$0xf]
    %v203 = vld [vmem:[#allocation7 + $0x70] sm:$0xf]
    %v204 = vld [vmem:[#allocation7 + $0x74] sm:$0xf]
    %v205 = vld [vmem:[#allocation7 + $0x78] sm:$0xf]
    %v206 = vld [vmem:[#allocation7 + $0x7c] sm:$0xf]
    %v207 = vld [vmem:[%s3] sm:$0x1]
    %v209 = vlaneseq
    %v210 = vshrl.u32 %v209, 7
    %v211 = vsub.s32 0, %v210
    %v212 = vrot.slane %v207, %v211
    %v246 = vunpack.c.l.b16 %v175
    %v247 = vunpack.c.l.b16 %v176
    %v248 = vunpack.c.l.b16 %v177
    %v249 = vunpack.c.l.b16 %v178
    %v250 = vunpack.c.l.b16 %v179
    %v251 = vunpack.c.l.b16 %v180
    %v252 = vunpack.c.l.b16 %v181
    %v253 = vunpack.c.l.b16 %v182
    %v254 = vunpack.c.l.b16 %v183
    %v255 = vunpack.c.l.b16 %v184
    %v256 = vunpack.c.l.b16 %v185
    %v257 = vunpack.c.l.b16 %v186
    %v258 = vunpack.c.l.b16 %v187
    %v259 = vunpack.c.l.b16 %v188
    %v260 = vunpack.c.l.b16 %v189
    %v261 = vunpack.c.l.b16 %v190
    %v262 = vunpack.c.l.b16 %v191
    %v263 = vunpack.c.l.b16 %v192
    %v264 = vunpack.c.l.b16 %v193
    %v265 = vunpack.c.l.b16 %v194
    %v266 = vunpack.c.l.b16 %v195
    %v267 = vunpack.c.l.b16 %v196
    %v268 = vunpack.c.l.b16 %v197
    %v269 = vunpack.c.l.b16 %v198
    %v270 = vunpack.c.l.b16 %v199
    %v271 = vunpack.c.l.b16 %v200
    %v272 = vunpack.c.l.b16 %v201
    %v273 = vunpack.c.l.b16 %v202
    %v274 = vunpack.c.l.b16 %v203
    %v275 = vunpack.c.l.b16 %v204
    %v276 = vunpack.c.l.b16 %v205
    %v277 = vunpack.c.l.b16 %v206
    %v278 = vpack.c.b16 %v247, %v246
    %v279 = vpack.c.b16 %v249, %v248
    %v280 = vpack.c.b16 %v251, %v250
    %v281 = vpack.c.b16 %v253, %v252
    %v282 = vpack.c.b16 %v255, %v254
    %v283 = vpack.c.b16 %v257, %v256
    %v284 = vpack.c.b16 %v259, %v258
    %v285 = vpack.c.b16 %v261, %v260
    %v286 = vpack.c.b16 %v263, %v262
    %v287 = vpack.c.b16 %v265, %v264
    %v288 = vpack.c.b16 %v267, %v266
    %v289 = vpack.c.b16 %v269, %v268
    %v290 = vpack.c.b16 %v271, %v270
    %v291 = vpack.c.b16 %v273, %v272
    %v292 = vpack.c.b16 %v275, %v274
    %v293 = vpack.c.b16 %v277, %v276
    %310 = vmatprep.subr.bf16.mxu0 0
    %311 = vmatpush1.bf16.msra.mxu0 %v278
    %312 = vmatprep.subr.bf16.mxu0 0
    %313 = vmatpush1.bf16.msra.mxu0 %v279
    %314 = vmatprep.subr.bf16.mxu0 0
    %315 = vmatpush1.bf16.msra.mxu0 %v280
    %316 = vmatprep.subr.bf16.mxu0 0
    %317 = vmatpush1.bf16.msra.mxu0 %v281
    %318 = vmatprep.subr.bf16.mxu0 0
    %319 = vmatpush1.bf16.msra.mxu0 %v282
    %320 = vmatprep.subr.bf16.mxu0 0
    %321 = vmatpush1.bf16.msra.mxu0 %v283
    %322 = vmatprep.subr.bf16.mxu0 0
    %323 = vmatpush1.bf16.msra.mxu0 %v284
    %324 = vmatprep.subr.bf16.mxu0 0
    %325 = vmatpush1.bf16.msra.mxu0 %v285
    %326 = vmatprep.subr.bf16.mxu0 0
    %327 = vmatpush1.bf16.msra.mxu0 %v286
    %328 = vmatprep.subr.bf16.mxu0 0
    %329 = vmatpush1.bf16.msra.mxu0 %v287
    %330 = vmatprep.subr.bf16.mxu0 0
    %331 = vmatpush1.bf16.msra.mxu0 %v288
    %332 = vmatprep.subr.bf16.mxu0 0
    %333 = vmatpush1.bf16.msra.mxu0 %v289
    %334 = vmatprep.subr.bf16.mxu0 0
    %335 = vmatpush1.bf16.msra.mxu0 %v290
    %336 = vmatprep.subr.bf16.mxu0 0
    %337 = vmatpush1.bf16.msra.mxu0 %v291
    %338 = vmatprep.subr.bf16.mxu0 0
    %339 = vmatpush1.bf16.msra.mxu0 %v292
    %340 = vmatprep.subr.bf16.mxu0 0
    %341 = vmatpush1.bf16.msra.mxu0 %v293
    %342 = vmatprep.mubr.bf16.mxu0 %v174
    %343 = vmatmul.mubr.bf16.gmra.mrb[0].mxu0 %v173
    %v344 = vpop.f32.mrb[0].mxu0
    %v345 = vadd.f32 %v212, %v344
    %v346 = vpop.f32.mrb[0].mxu0
    %v347 = vpop.f32.mrb[0].mxu0
    %v348 = vpop.f32.mrb[0].mxu0
    %349 = vdwg.mxu0
    %v350 = vld [vmem:[#allocation8] sm:$0xf]
    %v351 = vld [vmem:[#allocation8 + $0x4] sm:$0xf]
    %v352 = vld [vmem:[#allocation8 + $0x8] sm:$0xf]
    %v353 = vld [vmem:[#allocation8 + $0xc] sm:$0xf]
    %v354 = vld [vmem:[#allocation8 + $0x10] sm:$0xf]
    %v355 = vld [vmem:[#allocation8 + $0x14] sm:$0xf]
    %v356 = vld [vmem:[#allocation8 + $0x18] sm:$0xf]
    %v357 = vld [vmem:[#allocation8 + $0x1c] sm:$0xf]
    %v358 = vld [vmem:[#allocation8 + $0x20] sm:$0xf]
    %v359 = vld [vmem:[#allocation8 + $0x24] sm:$0xf]
    %v360 = vld [vmem:[#allocation8 + $0x28] sm:$0xf]
    %v361 = vld [vmem:[#allocation8 + $0x2c] sm:$0xf]
    %v362 = vld [vmem:[#allocation8 + $0x30] sm:$0xf]
    %v363 = vld [vmem:[#allocation8 + $0x34] sm:$0xf]
    %v364 = vld [vmem:[#allocation8 + $0x38] sm:$0xf]
    %v365 = vld [vmem:[#allocation8 + $0x3c] sm:$0xf]
    %v366 = vld [vmem:[%s5] sm:$0x1]
    %v368 = vlaneseq
    %v369 = vshrl.u32 %v368, 7
    %v370 = vsub.s32 0, %v369
    %v371 = vrot.slane %v366, %v370
    %v389 = vunpack.c.l.b16 %v350
    %v390 = vunpack.c.l.b16 %v351
    %v391 = vunpack.c.l.b16 %v352
    %v392 = vunpack.c.l.b16 %v353
    %v393 = vunpack.c.l.b16 %v354
    %v394 = vunpack.c.l.b16 %v355
    %v395 = vunpack.c.l.b16 %v356
    %v396 = vunpack.c.l.b16 %v357
    %v397 = vunpack.c.l.b16 %v358
    %v398 = vunpack.c.l.b16 %v359
    %v399 = vunpack.c.l.b16 %v360
    %v400 = vunpack.c.l.b16 %v361
    %v401 = vunpack.c.l.b16 %v362
    %v402 = vunpack.c.l.b16 %v363
    %v403 = vunpack.c.l.b16 %v364
    %v404 = vunpack.c.l.b16 %v365
    %v405 = vpack.c.b16 %v390, %v389
    %v406 = vpack.c.b16 %v392, %v391
    %v407 = vpack.c.b16 %v394, %v393
    %v408 = vpack.c.b16 %v396, %v395
    %v409 = vpack.c.b16 %v398, %v397
    %v410 = vpack.c.b16 %v400, %v399
    %v411 = vpack.c.b16 %v402, %v401
    %v412 = vpack.c.b16 %v404, %v403
    %421 = vmatprep.subr.bf16.mxu0 0
    %422 = vmatpush1.bf16.msra.mxu0 %v405
    %423 = vmatprep.subr.bf16.mxu0 0
    %424 = vmatpush1.bf16.msra.mxu0 %v406
    %425 = vmatprep.subr.bf16.mxu0 0
    %426 = vmatpush1.bf16.msra.mxu0 %v407
    %427 = vmatprep.subr.bf16.mxu0 0
    %428 = vmatpush1.bf16.msra.mxu0 %v408
    %429 = vmatprep.subr.bf16.mxu0 0
    %430 = vmatpush1.bf16.msra.mxu0 %v409
    %431 = vmatprep.subr.bf16.mxu0 0
    %432 = vmatpush1.bf16.msra.mxu0 %v410
    %433 = vmatprep.subr.bf16.mxu0 0
    %434 = vmatpush1.bf16.msra.mxu0 %v411
    %435 = vmatprep.subr.bf16.mxu0 0
    %436 = vmatpush1.bf16.msra.mxu0 %v412
    %437 = vmatprep.subr.bf16.mxu0 0
    %438 = vmatpush1.bf16.msra.mxu0 0
    %439 = vmatprep.subr.bf16.mxu0 0
    %440 = vmatpush1.bf16.msra.mxu0 0
    %441 = vmatprep.subr.bf16.mxu0 0
    %442 = vmatpush1.bf16.msra.mxu0 0
    %443 = vmatprep.subr.bf16.mxu0 0
    %444 = vmatpush1.bf16.msra.mxu0 0
    %445 = vmatprep.subr.bf16.mxu0 0
    %446 = vmatpush1.bf16.msra.mxu0 0
    %447 = vmatprep.subr.bf16.mxu0 0
    %448 = vmatpush1.bf16.msra.mxu0 0
    %449 = vmatprep.subr.bf16.mxu0 0
    %450 = vmatpush1.bf16.msra.mxu0 0
    %451 = vmatprep.subr.bf16.mxu0 0
    %452 = vmatpush1.bf16.msra.mxu0 0
    %453 = vmatprep.mubr.bf16.mxu0 0
    %454 = vmatmul.mubr.bf16.gmra.mrb[0].mxu0 %v173
    %v455 = vpop.f32.mrb[0].mxu0
    %v456 = vadd.f32 %v371, %v455
    %v457 = vpop.f32.mrb[0].mxu0
    %v458 = vpop.f32.mrb[0].mxu0
    %v459 = vpop.f32.mrb[0].mxu0
    %460 = vdwg.mxu0
    %v461 = vld [vmem:[%s6] sm:$0x1]
    %v462 = vld [vmem:[%s7] sm:$0x1]
    %463 = vadd.xlane.f32.xlu0 %v345
    %v464 = vpop.xlane.xlu0 %463
    %v465 = vmul.f32 %v464, 0.0625
    %v466 = vsub.f32 %v345, %v465
    %v467 = vsel %vm151, 1, 0
    %vm468 = vcmp.eq.s32.totalorder %v467, 1
    %v469 = vsel %vm468, %v466, 0.0
    %v470 = vmul.f32 %v469, %v469
    %471 = vadd.xlane.f32.xlu0 %v470
    %v472 = vpop.xlane.xlu0 %471
    %v473 = vmul.f32 %v472, 0.0625
    %v474 = vadd.f32 %v473, 1e-05
    %v475 = vrsqrt.pop %v474
    %v476 = vmul.f32 %v469, %v475
    %v478 = vlaneseq
    %v479 = vshrl.u32 %v478, 7
    %v480 = vsub.s32 0, %v479
    %v481 = vrot.slane %v461, %v480
    %v483 = vmul.f32 %v476, %v481
    %v485 = vlaneseq
    %v486 = vshrl.u32 %v485, 7
    %v487 = vsub.s32 0, %v486
    %v488 = vrot.slane %v462, %v487
    %v490 = vadd.f32 %v483, %v488
    %v491 = vadd.f32 %v456, %v490
    %v492 = vld [vmem:[%s8] sm:$0x1]
    %v493 = vld [vmem:[%s9] sm:$0x1]
    %494 = vadd.xlane.f32.xlu0 %v491
    %v495 = vpop.xlane.xlu0 %494
    %v496 = vmul.f32 %v495, 0.0625
    %v497 = vsub.f32 %v491, %v496
    %v498 = vsel %vm468, %v497, 0.0
    %v499 = vmul.f32 %v498, %v498
    %500 = vadd.xlane.f32.xlu0 %v499
    %v501 = vpop.xlane.xlu0 %500
    %v502 = vmul.f32 %v501, 0.0625
    %v503 = vadd.f32 %v502, 1e-05
    %v504 = vrsqrt.pop %v503
    %v505 = vmul.f32 %v498, %v504
    %v507 = vlaneseq
    %v508 = vshrl.u32 %v507, 7
    %v509 = vsub.s32 0, %v508
    %v510 = vrot.slane %v492, %v509
    %v512 = vmul.f32 %v505, %v510
    %v514 = vlaneseq
    %v515 = vshrl.u32 %v514, 7
    %v516 = vsub.s32 0, %v515
    %v517 = vrot.slane %v493, %v516
    %v519 = vadd.f32 %v512, %v517
    %v520 = vpack.c.bf16 %v519, %v519
    %v521 = vld [vmem:[#allocation10] sm:$0xf]
    %v522 = vld [vmem:[#allocation10 + $0x4] sm:$0xf]
    %v523 = vld [vmem:[#allocation10 + $0x8] sm:$0xf]
    %v524 = vld [vmem:[#allocation10 + $0xc] sm:$0xf]
    %v525 = vld [vmem:[#allocation10 + $0x10] sm:$0xf]
    %v526 = vld [vmem:[#allocation10 + $0x14] sm:$0xf]
    %v527 = vld [vmem:[#allocation10 + $0x18] sm:$0xf]
    %v528 = vld [vmem:[#allocation10 + $0x1c] sm:$0xf]
    %v529 = vld [vmem:[#allocation10 + $0x20] sm:$0xf]
    %v530 = vld [vmem:[#allocation10 + $0x24] sm:$0xf]
    %v531 = vld [vmem:[#allocation10 + $0x28] sm:$0xf]
    %v532 = vld [vmem:[#allocation10 + $0x2c] sm:$0xf]
    %v533 = vld [vmem:[#allocation10 + $0x30] sm:$0xf]
    %v534 = vld [vmem:[#allocation10 + $0x34] sm:$0xf]
    %v535 = vld [vmem:[#allocation10 + $0x38] sm:$0xf]
    %v536 = vld [vmem:[#allocation10 + $0x3c] sm:$0xf]
    %v537 = vld [vmem:[%s11] sm:$0x1]
    %v539 = vlaneseq
    %v540 = vshrl.u32 %v539, 7
    %v541 = vsub.s32 0, %v540
    %v542 = vrot.slane %v537, %v541
    %v560 = vunpack.c.l.b16 %v521
    %v561 = vunpack.c.l.b16 %v522
    %v562 = vunpack.c.l.b16 %v523
    %v563 = vunpack.c.l.b16 %v524
    %v564 = vunpack.c.l.b16 %v525
    %v565 = vunpack.c.l.b16 %v526
    %v566 = vunpack.c.l.b16 %v527
    %v567 = vunpack.c.l.b16 %v528
    %v568 = vunpack.c.l.b16 %v529
    %v569 = vunpack.c.l.b16 %v530
    %v570 = vunpack.c.l.b16 %v531
    %v571 = vunpack.c.l.b16 %v532
    %v572 = vunpack.c.l.b16 %v533
    %v573 = vunpack.c.l.b16 %v534
    %v574 = vunpack.c.l.b16 %v535
    %v575 = vunpack.c.l.b16 %v536
    %v576 = vpack.c.b16 %v561, %v560
    %v577 = vpack.c.b16 %v563, %v562
    %v578 = vpack.c.b16 %v565, %v564
    %v579 = vpack.c.b16 %v567, %v566
    %v580 = vpack.c.b16 %v569, %v568
    %v581 = vpack.c.b16 %v571, %v570
    %v582 = vpack.c.b16 %v573, %v572
    %v583 = vpack.c.b16 %v575, %v574
    %592 = vmatprep.subr.bf16.mxu0 0
    %593 = vmatpush1.bf16.msra.mxu0 %v576
    %594 = vmatprep.subr.bf16.mxu0 0
    %595 = vmatpush1.bf16.msra.mxu0 %v577
    %596 = vmatprep.subr.bf16.mxu0 0
    %597 = vmatpush1.bf16.msra.mxu0 %v578
    %598 = vmatprep.subr.bf16.mxu0 0
    %599 = vmatpush1.bf16.msra.mxu0 %v579
    %600 = vmatprep.subr.bf16.mxu0 0
    %601 = vmatpush1.bf16.msra.mxu0 %v580
    %602 = vmatprep.subr.bf16.mxu0 0
    %603 = vmatpush1.bf16.msra.mxu0 %v581
    %604 = vmatprep.subr.bf16.mxu0 0
    %605 = vmatpush1.bf16.msra.mxu0 %v582
    %606 = vmatprep.subr.bf16.mxu0 0
    %607 = vmatpush1.bf16.msra.mxu0 %v583
    %608 = vmatprep.subr.bf16.mxu0 0
    %609 = vmatpush1.bf16.msra.mxu0 0
    %610 = vmatprep.subr.bf16.mxu0 0
    %611 = vmatpush1.bf16.msra.mxu0 0
    %612 = vmatprep.subr.bf16.mxu0 0
    %613 = vmatpush1.bf16.msra.mxu0 0
    %614 = vmatprep.subr.bf16.mxu0 0
    %615 = vmatpush1.bf16.msra.mxu0 0
    %616 = vmatprep.subr.bf16.mxu0 0
    %617 = vmatpush1.bf16.msra.mxu0 0
    %618 = vmatprep.subr.bf16.mxu0 0
    %619 = vmatpush1.bf16.msra.mxu0 0
    %620 = vmatprep.subr.bf16.mxu0 0
    %621 = vmatpush1.bf16.msra.mxu0 0
    %622 = vmatprep.subr.bf16.mxu0 0
    %623 = vmatpush1.bf16.msra.mxu0 0
    %624 = vmatprep.mubr.bf16.mxu0 0
    %625 = vmatmul.mubr.bf16.gmra.mrb[0].mxu0 %v520
    %v626 = vpop.f32.mrb[0].mxu0
    %v627 = vadd.f32 %v542, %v626
    %v628 = vpop.f32.mrb[0].mxu0
    %v629 = vpop.f32.mrb[0].mxu0
    %v630 = vpop.f32.mrb[0].mxu0
    %631 = vdwg.mxu0
    %v632 = vmax.f32 %v627, 0.0
    %v633 = vpack.c.bf16 %v632, %v632
    %v634 = vld [vmem:[#allocation11] sm:$0xf]
    %v635 = vld [vmem:[#allocation11 + $0x4] sm:$0xf]
    %v636 = vld [vmem:[#allocation11 + $0x8] sm:$0xf]
    %v637 = vld [vmem:[#allocation11 + $0xc] sm:$0xf]
    %v638 = vld [vmem:[#allocation11 + $0x10] sm:$0xf]
    %v639 = vld [vmem:[#allocation11 + $0x14] sm:$0xf]
    %v640 = vld [vmem:[#allocation11 + $0x18] sm:$0xf]
    %v641 = vld [vmem:[#allocation11 + $0x1c] sm:$0xf]
    %v642 = vld [vmem:[#allocation11 + $0x20] sm:$0xf]
    %v643 = vld [vmem:[#allocation11 + $0x24] sm:$0xf]
    %v644 = vld [vmem:[#allocation11 + $0x28] sm:$0xf]
    %v645 = vld [vmem:[#allocation11 + $0x2c] sm:$0xf]
    %v646 = vld [vmem:[#allocation11 + $0x30] sm:$0xf]
    %v647 = vld [vmem:[#allocation11 + $0x34] sm:$0xf]
    %v648 = vld [vmem:[#allocation11 + $0x38] sm:$0xf]
    %v649 = vld [vmem:[#allocation11 + $0x3c] sm:$0xf]
    %v650 = vld [vmem:[%s13] sm:$0x1]
    %v652 = vlaneseq
    %v653 = vshrl.u32 %v652, 7
    %v654 = vsub.s32 0, %v653
    %v655 = vrot.slane %v650, %v654
    %v673 = vunpack.c.l.b16 %v634
    %v674 = vunpack.c.l.b16 %v635
    %v675 = vunpack.c.l.b16 %v636
    %v676 = vunpack.c.l.b16 %v637
    %v677 = vunpack.c.l.b16 %v638
    %v678 = vunpack.c.l.b16 %v639
    %v679 = vunpack.c.l.b16 %v640
    %v680 = vunpack.c.l.b16 %v641
    %v681 = vunpack.c.l.b16 %v642
    %v682 = vunpack.c.l.b16 %v643
    %v683 = vunpack.c.l.b16 %v644
    %v684 = vunpack.c.l.b16 %v645
    %v685 = vunpack.c.l.b16 %v646
    %v686 = vunpack.c.l.b16 %v647
    %v687 = vunpack.c.l.b16 %v648
    %v688 = vunpack.c.l.b16 %v649
    %v689 = vpack.c.b16 %v674, %v673
    %v690 = vpack.c.b16 %v676, %v675
    %v691 = vpack.c.b16 %v678, %v677
    %v692 = vpack.c.b16 %v680, %v679
    %v693 = vpack.c.b16 %v682, %v681
    %v694 = vpack.c.b16 %v684, %v683
    %v695 = vpack.c.b16 %v686, %v685
    %v696 = vpack.c.b16 %v688, %v687
    %705 = vmatprep.subr.bf16.mxu0 0
    %706 = vmatpush1.bf16.msra.mxu0 %v689
    %707 = vmatprep.subr.bf16.mxu0 0
    %708 = vmatpush1.bf16.msra.mxu0 %v690
    %709 = vmatprep.subr.bf16.mxu0 0
    %710 = vmatpush1.bf16.msra.mxu0 %v691
    %711 = vmatprep.subr.bf16.mxu0 0
    %712 = vmatpush1.bf16.msra.mxu0 %v692
    %713 = vmatprep.subr.bf16.mxu0 0
    %714 = vmatpush1.bf16.msra.mxu0 %v693
    %715 = vmatprep.subr.bf16.mxu0 0
    %716 = vmatpush1.bf16.msra.mxu0 %v694
    %717 = vmatprep.subr.bf16.mxu0 0
    %718 = vmatpush1.bf16.msra.mxu0 %v695
    %719 = vmatprep.subr.bf16.mxu0 0
    %720 = vmatpush1.bf16.msra.mxu0 %v696
    %721 = vmatprep.subr.bf16.mxu0 0
    %722 = vmatpush1.bf16.msra.mxu0 0
    %723 = vmatprep.subr.bf16.mxu0 0
    %724 = vmatpush1.bf16.msra.mxu0 0
    %725 = vmatprep.subr.bf16.mxu0 0
    %726 = vmatpush1.bf16.msra.mxu0 0
    %727 = vmatprep.subr.bf16.mxu0 0
    %728 = vmatpush1.bf16.msra.mxu0 0
    %729 = vmatprep.subr.bf16.mxu0 0
    %730 = vmatpush1.bf16.msra.mxu0 0
    %731 = vmatprep.subr.bf16.mxu0 0
    %732 = vmatpush1.bf16.msra.mxu0 0
    %733 = vmatprep.subr.bf16.mxu0 0
    %734 = vmatpush1.bf16.msra.mxu0 0
    %735 = vmatprep.subr.bf16.mxu0 0
    %736 = vmatpush1.bf16.msra.mxu0 0
    %737 = vmatprep.mubr.bf16.mxu0 0
    %738 = vmatmul.mubr.bf16.gmra.mrb[0].mxu0 %v633
    %v739 = vpop.f32.mrb[0].mxu0
    %v740 = vadd.f32 %v655, %v739
    %v741 = vpop.f32.mrb[0].mxu0
    %v742 = vpop.f32.mrb[0].mxu0
    %v743 = vpop.f32.mrb[0].mxu0
    %744 = vdwg.mxu0
    %v745 = vadd.f32 %v740, %v519
    %746 = vadd.xlane.f32.xlu0 %v745
    %v747 = vpop.xlane.xlu0 %746
    %v748 = vmul.f32 %v747, 0.0625
    %v749 = vsub.f32 %v745, %v748
    %v750 = vsel %vm468, %v749, 0.0
    %v751 = vmul.f32 %v750, %v750
    %752 = vadd.xlane.f32.xlu0 %v751
    %v753 = vpop.xlane.xlu0 %752
    %v754 = vmul.f32 %v753, 0.0625
    %v755 = vadd.f32 %v754, 1e-05
    %v756 = vrsqrt.pop %v755
    %v757 = vmul.f32 %v750, %v756
    %v758 = vmul.f32 %v757, %v510
    %v759 = vadd.f32 %v758, %v517
    %v760 = vpack.c.bf16 %v759, %v759
    %v761 = vld [vmem:[#allocation13] sm:$0xf]
    %v762 = vld [vmem:[#allocation13 + $0x4] sm:$0xf]
    %v763 = vld [vmem:[#allocation13 + $0x8] sm:$0xf]
    %v764 = vld [vmem:[#allocation13 + $0xc] sm:$0xf]
    %v765 = vld [vmem:[#allocation13 + $0x10] sm:$0xf]
    %v766 = vld [vmem:[#allocation13 + $0x14] sm:$0xf]
    %v767 = vld [vmem:[#allocation13 + $0x18] sm:$0xf]
    %v768 = vld [vmem:[#allocation13 + $0x1c] sm:$0xf]
    %v769 = vld [vmem:[#allocation13 + $0x20] sm:$0xf]
    %v770 = vld [vmem:[#allocation13 + $0x24] sm:$0xf]
    %v771 = vld [vmem:[#allocation13 + $0x28] sm:$0xf]
    %v772 = vld [vmem:[#allocation13 + $0x2c] sm:$0xf]
    %v773 = vld [vmem:[#allocation13 + $0x30] sm:$0xf]
    %v774 = vld [vmem:[#allocation13 + $0x34] sm:$0xf]
    %v775 = vld [vmem:[#allocation13 + $0x38] sm:$0xf]
    %v776 = vld [vmem:[#allocation13 + $0x3c] sm:$0xf]
    %v777 = vld [vmem:[%s15] sm:$0x1]
    %v779 = vlaneseq
    %v780 = vshrl.u32 %v779, 7
    %v781 = vsub.s32 0, %v780
    %v782 = vrot.slane %v777, %v781
    %v800 = vunpack.c.l.b16 %v761
    %v801 = vunpack.c.l.b16 %v762
    %v802 = vunpack.c.l.b16 %v763
    %v803 = vunpack.c.l.b16 %v764
    %v804 = vunpack.c.l.b16 %v765
    %v805 = vunpack.c.l.b16 %v766
    %v806 = vunpack.c.l.b16 %v767
    %v807 = vunpack.c.l.b16 %v768
    %v808 = vunpack.c.l.b16 %v769
    %v809 = vunpack.c.l.b16 %v770
    %v810 = vunpack.c.l.b16 %v771
    %v811 = vunpack.c.l.b16 %v772
    %v812 = vunpack.c.l.b16 %v773
    %v813 = vunpack.c.l.b16 %v774
    %v814 = vunpack.c.l.b16 %v775
    %v815 = vunpack.c.l.b16 %v776
    %v816 = vpack.c.b16 %v801, %v800
    %v817 = vpack.c.b16 %v803, %v802
    %v818 = vpack.c.b16 %v805, %v804
    %v819 = vpack.c.b16 %v807, %v806
    %v820 = vpack.c.b16 %v809, %v808
    %v821 = vpack.c.b16 %v811, %v810
    %v822 = vpack.c.b16 %v813, %v812
    %v823 = vpack.c.b16 %v815, %v814
    %832 = vmatprep.subr.bf16.mxu0 0
    %833 = vmatpush1.bf16.msra.mxu0 %v816
    %834 = vmatprep.subr.bf16.mxu0 0
    %835 = vmatpush1.bf16.msra.mxu0 %v817
    %836 = vmatprep.subr.bf16.mxu0 0
    %837 = vmatpush1.bf16.msra.mxu0 %v818
    %838 = vmatprep.subr.bf16.mxu0 0
    %839 = vmatpush1.bf16.msra.mxu0 %v819
    %840 = vmatprep.subr.bf16.mxu0 0
    %841 = vmatpush1.bf16.msra.mxu0 %v820
    %842 = vmatprep.subr.bf16.mxu0 0
    %843 = vmatpush1.bf16.msra.mxu0 %v821
    %844 = vmatprep.subr.bf16.mxu0 0
    %845 = vmatpush1.bf16.msra.mxu0 %v822
    %846 = vmatprep.subr.bf16.mxu0 0
    %847 = vmatpush1.bf16.msra.mxu0 %v823
    %848 = vmatprep.subr.bf16.mxu0 0
    %849 = vmatpush1.bf16.msra.mxu0 0
    %850 = vmatprep.subr.bf16.mxu0 0
    %851 = vmatpush1.bf16.msra.mxu0 0
    %852 = vmatprep.subr.bf16.mxu0 0
    %853 = vmatpush1.bf16.msra.mxu0 0
    %854 = vmatprep.subr.bf16.mxu0 0
    %855 = vmatpush1.bf16.msra.mxu0 0
    %856 = vmatprep.subr.bf16.mxu0 0
    %857 = vmatpush1.bf16.msra.mxu0 0
    %858 = vmatprep.subr.bf16.mxu0 0
    %859 = vmatpush1.bf16.msra.mxu0 0
    %860 = vmatprep.subr.bf16.mxu0 0
    %861 = vmatpush1.bf16.msra.mxu0 0
    %862 = vmatprep.subr.bf16.mxu0 0
    %863 = vmatpush1.bf16.msra.mxu0 0
    %864 = vmatprep.mubr.bf16.mxu0 0
    %865 = vmatmul.mubr.bf16.gmra.mrb[0].mxu0 %v760
    %v866 = vpop.f32.mrb[0].mxu0
    %v867 = vadd.f32 %v782, %v866
    %v868 = vpop.f32.mrb[0].mxu0
    %v869 = vpop.f32.mrb[0].mxu0
    %v870 = vpop.f32.mrb[0].mxu0
    %871 = vdwg.mxu0
    %v872 = vmul.f32 %v867, %v171
    %v873 = vadd.f32 %v872, %v154
    %874 = vst [vmem:[#allocation14] sm:$0xff] %v873
    // Predicated region
    $region94: #{tpu_custom_call.1} parent=1 // pred_check
      _
    $region95: #{tpu_custom_call.1} parent=1 // pred_check_branch
      %876 = sbr.rel (0) target = $region97
    $region96: #{tpu_custom_call.1} parent=1 // pred_region
      %s878 = ssub.s32 128, 128
      %879 = vsyncadd [#allocation4], %s878
      %s881 = sshll.u32 [#allocation14], 4
      %s882 = int_to_ptr.vmem [resolvable:$true] %s881
      %884 = dma.vmem_to_hbm [thread:$0]  %s882, 128, %s16, [#allocation4]
    $region97: #{tpu_custom_call.1} parent=1 // pred_fallthru
      _
    // Predicated region
    $region98: #{tpu_custom_call.1} parent=1 // pred_check
      _
    $region99: #{tpu_custom_call.1} parent=1 // pred_check_branch
      %886 = sbr.rel (0) target = $region101
    $region100: #{tpu_custom_call.1} parent=1 // pred_region
      %887 = dma.done [#allocation4], 128
    $region101: #{tpu_custom_call.1} parent=1 // pred_fallthru
      _
    %888 = vsyncpa [#allocation3], 1
    %889 = vsyncpa [#allocation6], 1
    %890 = vsyncpa [#allocation9], 1
    %891 = vsyncpa [#allocation12], 1
    %892 = vsyncpa [#allocation4], 1

// kernel: tpu_custom_call.1
$region0: #{tpu_custom_call.1}
  #allocation0 [shape = 'u32[]', space=smem, size = 0x4, offset = 0x4, fixed_abs, tag = 'smem constant byte address 0x4 - core index']
  #allocation1 [shape = 'u32[144,128]{1,0:T(1,128)}', space=vmem, size = 0x12000, scoped, tag = 'internal scratch']
  %s0 = inlined_call_operand.hbm [shape: f32[8,128], index: 0, kind: input, shape index: {}]
  %s1 = inlined_call_operand.hbm [shape: f32[8,128], index: 1, kind: input, shape index: {}]
  %s2 = inlined_call_operand.hbm [shape: bf16[256,128], index: 2, kind: input, shape index: {}]
  %s3 = inlined_call_operand.vmem [shape: f32[1,128], index: 3, kind: input, shape index: {}]
  %s4 = inlined_call_operand.hbm [shape: bf16[128,128], index: 4, kind: input, shape index: {}]
  %s5 = inlined_call_operand.vmem [shape: f32[1,128], index: 5, kind: input, shape index: {}]
  %s6 = inlined_call_operand.vmem [shape: f32[1,128], index: 6, kind: input, shape index: {}]
  %s7 = inlined_call_operand.vmem [shape: f32[1,128], index: 7, kind: input, shape index: {}]
  %s8 = inlined_call_operand.vmem [shape: f32[1,128], index: 8, kind: input, shape index: {}]
  %s9 = inlined_call_operand.vmem [shape: f32[1,128], index: 9, kind: input, shape index: {}]
  %s10 = inlined_call_operand.hbm [shape: bf16[128,128], index: 10, kind: input, shape index: {}]
  %s11 = inlined_call_operand.vmem [shape: f32[1,128], index: 11, kind: input, shape index: {}]
  %s12 = inlined_call_operand.hbm [shape: bf16[128,128], index: 12, kind: input, shape index: {}]
  %s13 = inlined_call_operand.vmem [shape: f32[1,128], index: 13, kind: input, shape index: {}]
  %s14 = inlined_call_operand.hbm [shape: bf16[128,128], index: 14, kind: input, shape index: {}]
  %s15 = inlined_call_operand.vmem [shape: f32[1,128], index: 15, kind: input, shape index: {}]
  %s16 = inlined_call_operand.hbm [shape: f32[8,128], index: 16, kind: output, shape index: {}]
  %s17 = sld [smem:[#allocation0]]
  $region102: #{tpu_custom_call.1} parent=0
    _
  %s19 = ssub.s32 1, %s17
  %s20 = scalar_select 0, %s19, %s17
  $region1: #{tpu_custom_call.1} parent=0
    #allocation2 [shape = 'u8[4096]{0}', space=vmem, size = 0x1000, scoped, tag = 'input window, operand 0, single buffered']
    #allocation3 [shape = 's32[1]{0}', space=sflag, size = 0x4, scoped, tag = 'scoped memory for tpu_custom_call.1']
    #allocation4 [shape = 's32[1]{0}', space=sflag, size = 0x4, scoped, tag = 'scoped memory for tpu_custom_call.1']
    #allocation5 [shape = 'u8[4096]{0}', space=vmem, size = 0x1000, scoped, tag = 'input window, operand 1, single buffered']
    #allocation6 [shape = 's32[1]{0}', space=sflag, size = 0x4, scoped, tag = 'scoped memory for tpu_custom_call.1']
    #allocation7 [shape = 'u8[65536]{0}', space=vmem, size = 0x10000, scoped, tag = 'input window, operand 2, single buffered']
    #allocation8 [shape = 'u8[32768]{0}', space=vmem, size = 0x8000, scoped, tag = 'input window, operand 4, single buffered']
    #allocation9 [shape = 's32[1]{0}', space=sflag, size = 0x4, scoped, tag = 'scoped memory for tpu_custom_call.1']
    #allocation10 [shape = 'u8[32768]{0}', space=vmem, size = 0x8000, scoped, tag = 'input window, operand 10, single buffered']
    #allocation11 [shape = 'u8[32768]{0}', space=vmem, size = 0x8000, scoped, tag = 'input window, operand 12, single buffered']
    #allocation12 [shape = 's32[1]{0}', space=sflag, size = 0x4, scoped, tag = 'scoped memory for tpu_custom_call.1']
    #allocation13 [shape = 'u8[32768]{0}', space=vmem, size = 0x8000, scoped, tag = 'input window, operand 14, single buffered']
    #allocation14 [shape = 'u8[4096]{0}', space=vmem, size = 0x1000, scoped, tag = 'output window, operand 0, single buffered']
    %21 = vsyncpa [#allocation3], 0
    %22 = vsyncpa [#allocation6], 0
    %23 = vsyncpa [#allocation9], 0
    %24 = vsyncpa [#allocation12], 0
    %25 = vsyncpa [#allocation4], 0
    // Predicated region
    $region2: #{tpu_custom_call.1} parent=1 // pred_check
      _
    $region3: #{tpu_custom_call.1} parent=1 // pred_check_branch
      %27 = sbr.rel (0) target = $region5
    $region4: #{tpu_custom_call.1} parent=1 // pred_region
      %s29 = ssub.s32 128, 128
      %30 = vsyncadd [#allocation3], %s29
      %s32 = sshll.u32 [#allocation2], 4
      %s33 = int_to_ptr.vmem [resolvable:$true] %s32
      %35 = dma.hbm_to_vmem [thread:$0]  %s0, 128, %s33, [#allocation3]
    $region5: #{tpu_custom_call.1} parent=1 // pred_fallthru
      _
    // Predicated region
    $region6: #{tpu_custom_call.1} parent=1 // pred_check
      _
    $region7: #{tpu_custom_call.1} parent=1 // pred_check_branch
      %37 = sbr.rel (0) target = $region9
    $region8: #{tpu_custom_call.1} parent=1 // pred_region
      %s39 = ssub.s32 128, 128
      %40 = vsyncadd [#allocation6], %s39
      %s42 = sshll.u32 [#allocation5], 4
      %s43 = int_to_ptr.vmem [resolvable:$true] %s42
      %45 = dma.hbm_to_vmem [thread:$0]  %s1, 128, %s43, [#allocation6]
    $region9: #{tpu_custom_call.1} parent=1 // pred_fallthru
      _
    // Predicated region
    $region10: #{tpu_custom_call.1} parent=1 // pred_check
      _
    $region11: #{tpu_custom_call.1} parent=1 // pred_check_branch
      %47 = sbr.rel (0) target = $region13
    $region12: #{tpu_custom_call.1} parent=1 // pred_region
      %s49 = ssub.s32 2048, 2048
      %50 = vsyncadd [#allocation6], %s49
      %s51 = sshll.u32 [#allocation7], 4
      %s52 = int_to_ptr.vmem [resolvable:$true] %s51
      %57 = dma.hbm_to_vmem [thread:$0]  %s2, 2048, %s52, [#allocation6], 64, 64, 4
    $region13: #{tpu_custom_call.1} parent=1 // pred_fallthru
      _
    // Predicated region
    $region14: #{tpu_custom_call.1} parent=1 // pred_check
      _
    $region15: #{tpu_custom_call.1} parent=1 // pred_check_branch
      %59 = sbr.rel (0) target = $region17
    $region16: #{tpu_custom_call.1} parent=1 // pred_region
      _
    $region17: #{tpu_custom_call.1} parent=1 // pred_fallthru
      _
    // Predicated region
    $region18: #{tpu_custom_call.1} parent=1 // pred_check
      _
    $region19: #{tpu_custom_call.1} parent=1 // pred_check_branch
      %61 = sbr.rel (0) target = $region21
    $region20: #{tpu_custom_call.1} parent=1 // pred_region
      %s63 = ssub.s32 1024, 1024
      %64 = vsyncadd [#allocation9], %s63
      %s65 = sshll.u32 [#allocation8], 4
      %s66 = int_to_ptr.vmem [resolvable:$true] %s65
      %71 = dma.hbm_to_vmem [thread:$0]  %s4, 1024, %s66, [#allocation9], 64, 64, 4
    $region21: #{tpu_custom_call.1} parent=1 // pred_fallthru
      _
    // Predicated region
    $region22: #{tpu_custom_call.1} parent=1 // pred_check
      _
    $region23: #{tpu_custom_call.1} parent=1 // pred_check_branch
      %73 = sbr.rel (0) target = $region25
    $region24: #{tpu_custom_call.1} parent=1 // pred_region
      _
    $region25: #{tpu_custom_call.1} parent=1 // pred_fallthru
      _
    // Predicated region
    $region26: #{tpu_custom_call.1} parent=1 // pred_check
      _
    $region27: #{tpu_custom_call.1} parent=1 // pred_check_branch
      %75 = sbr.rel (0) target = $region29
    $region28: #{tpu_custom_call.1} parent=1 // pred_region
      _
    $region29: #{tpu_custom_call.1} parent=1 // pred_fallthru
      _
    // Predicated region
    $region30: #{tpu_custom_call.1} parent=1 // pred_check
      _
    $region31: #{tpu_custom_call.1} parent=1 // pred_check_branch
      %77 = sbr.rel (0) target = $region33
    $region32: #{tpu_custom_call.1} parent=1 // pred_region
      _
    $region33: #{tpu_custom_call.1} parent=1 // pred_fallthru
      _
    // Predicated region
    $region34: #{tpu_custom_call.1} parent=1 // pred_check
      _
    $region35: #{tpu_custom_call.1} parent=1 // pred_check_branch
      %79 = sbr.rel (0) target = $region37
    $region36: #{tpu_custom_call.1} parent=1 // pred_region
      _
    $region37: #{tpu_custom_call.1} parent=1 // pred_fallthru
      _
    // Predicated region
    $region38: #{tpu_custom_call.1} parent=1 // pred_check
      _
    $region39: #{tpu_custom_call.1} parent=1 // pred_check_branch
      %81 = sbr.rel (0) target = $region41
    $region40: #{tpu_custom_call.1} parent=1 // pred_region
      _
    $region41: #{tpu_custom_call.1} parent=1 // pred_fallthru
      _
    // Predicated region
    $region42: #{tpu_custom_call.1} parent=1 // pred_check
      _
    $region43: #{tpu_custom_call.1} parent=1 // pred_check_branch
      %83 = sbr.rel (0) target = $region45
    $region44: #{tpu_custom_call.1} parent=1 // pred_region
      %s85 = ssub.s32 1024, 1024
      %86 = vsyncadd [#allocation9], %s85
      %s87 = sshll.u32 [#allocation10], 4
      %s88 = int_to_ptr.vmem [resolvable:$true] %s87
      %93 = dma.hbm_to_vmem [thread:$0]  %s10, 1024, %s88, [#allocation9], 64, 64, 4
    $region45: #{tpu_custom_call.1} parent=1 // pred_fallthru
      _
    // Predicated region
    $region46: #{tpu_custom_call.1} parent=1 // pred_check
      _
    $region47: #{tpu_custom_call.1} parent=1 // pred_check_branch
      %95 = sbr.rel (0) target = $region49
    $region48: #{tpu_custom_call.1} parent=1 // pred_region
      _
    $region49: #{tpu_custom_call.1} parent=1 // pred_fallthru
      _
    // Predicated region
    $region50: #{tpu_custom_call.1} parent=1 // pred_check
      _
    $region51: #{tpu_custom_call.1} parent=1 // pred_check_branch
      %97 = sbr.rel (0) target = $region53
    $region52: #{tpu_custom_call.1} parent=1 // pred_region
      %s99 = ssub.s32 1024, 1024
      %100 = vsyncadd [#allocation12], %s99
      %s101 = sshll.u32 [#allocation11], 4
      %s102 = int_to_ptr.vmem [resolvable:$true] %s101
      %107 = dma.hbm_to_vmem [thread:$0]  %s12, 1024, %s102, [#allocation12], 64, 64, 4
    $region53: #{tpu_custom_call.1} parent=1 // pred_fallthru
      _
    // Predicated region
    $region54: #{tpu_custom_call.1} parent=1 // pred_check
      _
    $region55: #{tpu_custom_call.1} parent=1 // pred_check_branch
      %109 = sbr.rel (0) target = $region57
    $region56: #{tpu_custom_call.1} parent=1 // pred_region
      _
    $region57: #{tpu_custom_call.1} parent=1 // pred_fallthru
      _
    // Predicated region
    $region58: #{tpu_custom_call.1} parent=1 // pred_check
      _
    $region59: #{tpu_custom_call.1} parent=1 // pred_check_branch
      %111 = sbr.rel (0) target = $region61
    $region60: #{tpu_custom_call.1} parent=1 // pred_region
      %s113 = ssub.s32 1024, 1024
      %114 = vsyncadd [#allocation12], %s113
      %s115 = sshll.u32 [#allocation13], 4
      %s116 = int_to_ptr.vmem [resolvable:$true] %s115
      %121 = dma.hbm_to_vmem [thread:$0]  %s14, 1024, %s116, [#allocation12], 64, 64, 4
    $region61: #{tpu_custom_call.1} parent=1 // pred_fallthru
      _
    // Predicated region
    $region62: #{tpu_custom_call.1} parent=1 // pred_check
      _
    $region63: #{tpu_custom_call.1} parent=1 // pred_check_branch
      %123 = sbr.rel (0) target = $region65
    $region64: #{tpu_custom_call.1} parent=1 // pred_region
      _
    $region65: #{tpu_custom_call.1} parent=1 // pred_fallthru
      _
    // Predicated region
    $region66: #{tpu_custom_call.1} parent=1 // pred_check
      _
    $region67: #{tpu_custom_call.1} parent=1 // pred_check_branch
      %125 = sbr.rel (0) target = $region69
    $region68: #{tpu_custom_call.1} parent=1 // pred_region
      %126 = dma.done [#allocation3], 128
    $region69: #{tpu_custom_call.1} parent=1 // pred_fallthru
      _
    // Predicated region
    $region70: #{tpu_custom_call.1} parent=1 // pred_check
      _
    $region71: #{tpu_custom_call.1} parent=1 // pred_check_branch
      %128 = sbr.rel (0) target = $region73
    $region72: #{tpu_custom_call.1} parent=1 // pred_region
      %129 = dma.done [#allocation6], 128
    $region73: #{tpu_custom_call.1} parent=1 // pred_fallthru
      _
    // Predicated region
    $region74: #{tpu_custom_call.1} parent=1 // pred_check
      _
    $region75: #{tpu_custom_call.1} parent=1 // pred_check_branch
      %131 = sbr.rel (0) target = $region77
    $region76: #{tpu_custom_call.1} parent=1 // pred_region
      %132 = dma.done [#allocation6], 2048
    $region77: #{tpu_custom_call.1} parent=1 // pred_fallthru
      _
    // Predicated region
    $region78: #{tpu_custom_call.1} parent=1 // pred_check
      _
    $region79: #{tpu_custom_call.1} parent=1 // pred_check_branch
      %134 = sbr.rel (0) target = $region81
    $region80: #{tpu_custom_call.1} parent=1 // pred_region
      %135 = dma.done [#allocation9], 1024
    $region81: #{tpu_custom_call.1} parent=1 // pred_fallthru
      _
    // Predicated region
    $region82: #{tpu_custom_call.1} parent=1 // pred_check
      _
    $region83: #{tpu_custom_call.1} parent=1 // pred_check_branch
      %137 = sbr.rel (0) target = $region85
    $region84: #{tpu_custom_call.1} parent=1 // pred_region
      %138 = dma.done [#allocation9], 1024
    $region85: #{tpu_custom_call.1} parent=1 // pred_fallthru
      _
    // Predicated region
    $region86: #{tpu_custom_call.1} parent=1 // pred_check
      _
    $region87: #{tpu_custom_call.1} parent=1 // pred_check_branch
      %140 = sbr.rel (0) target = $region89
    $region88: #{tpu_custom_call.1} parent=1 // pred_region
      %141 = dma.done [#allocation12], 1024
    $region89: #{tpu_custom_call.1} parent=1 // pred_fallthru
      _
    // Predicated region
    $region90: #{tpu_custom_call.1} parent=1 // pred_check
      _
    $region91: #{tpu_custom_call.1} parent=1 // pred_check_branch
      %143 = sbr.rel (0) target = $region93
    $region92: #{tpu_custom_call.1} parent=1 // pred_region
      %144 = dma.done [#allocation12], 1024
    $region93: #{tpu_custom_call.1} parent=1 // pred_fallthru
      _
    %v146 = vld [vmem:[#allocation5] sm:$0xff]
    %v147 = vld [vmem:[#allocation2] sm:$0xff]
    %v148 = vlaneseq
    %v149 = vand.u32 %v148, 127
    %vm150 = vcmp.lt.s32.totalorder %v149, 8
    %vm151 = vcmp.lt.s32.totalorder %v149, 16
    %152 = vadd.xlane.f32.xlu0 %v146
    %v153 = vpop.xlane.xlu0 %152
    %v154 = vmul.f32 %v153, 0.125
    %v155 = vsub.f32 %v146, %v154
    %v156 = vsel %vm150, 1, 0
    %vm157 = vcmp.eq.s32.totalorder %v156, 1
    %v158 = vsel %vm157, %v155, 0.0
    %v159 = vmul.f32 %v158, %v158
    %160 = vadd.xlane.f32.xlu0 %v159
    %v161 = vpop.xlane.xlu0 %160
    %v162 = vmul.f32 %v161, 0.125
    %v163 = vadd.f32 %v162, 1e-05
    %v164 = vrsqrt.pop %v163
    %v165 = vrsqrt.pop %v163
    %v166 = vmul.f32 %v163, %v165
    %vm167 = vcmp.eq.f32.partialorder %v163, inf
    %v168 = vsel %vm167, %v163, %v166
    %vm169 = vcmp.eq.f32.partialorder %v163, 0.0
    %v170 = vand.u32 %v163, 2147483648
    %v171 = vsel %vm169, %v170, %v168
    %v172 = vmul.f32 %v158, %v164
    %v173 = vpack.c.bf16 %v172, %v172
    %v174 = vpack.c.bf16 %v147, %v147
    %v175 = vld [vmem:[#allocation7] sm:$0xf]
    %v176 = vld [vmem:[#allocation7 + $0x4] sm:$0xf]
    %v177 = vld [vmem:[#allocation7 + $0x8] sm:$0xf]
    %v178 = vld [vmem:[#allocation7 + $0xc] sm:$0xf]
    %v179 = vld [vmem:[#allocation7 + $0x10] sm:$0xf]
    %v180 = vld [vmem:[#allocation7 + $0x14] sm:$0xf]
    %v181 = vld [vmem:[#allocation7 + $0x18] sm:$0xf]
    %v182 = vld [vmem:[#allocation7 + $0x1c] sm:$0xf]
    %v183 = vld [vmem:[#allocation7 + $0x20] sm:$0xf]
    %v184 = vld [vmem:[#allocation7 + $0x24] sm:$0xf]
    %v185 = vld [vmem:[#allocation7 + $0x28] sm:$0xf]
    %v186 = vld [vmem:[#allocation7 + $0x2c] sm:$0xf]
    %v187 = vld [vmem:[#allocation7 + $0x30] sm:$0xf]
    %v188 = vld [vmem:[#allocation7 + $0x34] sm:$0xf]
    %v189 = vld [vmem:[#allocation7 + $0x38] sm:$0xf]
    %v190 = vld [vmem:[#allocation7 + $0x3c] sm:$0xf]
    %v191 = vld [vmem:[#allocation7 + $0x40] sm:$0xf]
    %v192 = vld [vmem:[#allocation7 + $0x44] sm:$0xf]
    %v193 = vld [vmem:[#allocation7 + $0x48] sm:$0xf]
    %v194 = vld [vmem:[#allocation7 + $0x4c] sm:$0xf]
    %v195 = vld [vmem:[#allocation7 + $0x50] sm:$0xf]
    %v196 = vld [vmem:[#allocation7 + $0x54] sm:$0xf]
    %v197 = vld [vmem:[#allocation7 + $0x58] sm:$0xf]
    %v198 = vld [vmem:[#allocation7 + $0x5c] sm:$0xf]
    %v199 = vld [vmem:[#allocation7 + $0x60] sm:$0xf]
    %v200 = vld [vmem:[#allocation7 + $0x64] sm:$0xf]
    %v201 = vld [vmem:[#allocation7 + $0x68] sm:$0xf]
    %v202 = vld [vmem:[#allocation7 + $0x6c] sm:$0xf]
    %v203 = vld [vmem:[#allocation7 + $0x70] sm:$0xf]
    %v204 = vld [vmem:[#allocation7 + $0x74] sm:$0xf]
    %v205 = vld [vmem:[#allocation7 + $0x78] sm:$0xf]
    %v206 = vld [vmem:[#allocation7 + $0x7c] sm:$0xf]
    %v207 = vld [vmem:[%s3] sm:$0x1]
    %v209 = vlaneseq
    %v210 = vshrl.u32 %v209, 7
    %v211 = vsub.s32 0, %v210
    %v212 = vrot.slane %v207, %v211
    %v246 = vunpack.c.l.b16 %v175
    %v247 = vunpack.c.l.b16 %v176
    %v248 = vunpack.c.l.b16 %v177
    %v249 = vunpack.c.l.b16 %v178
    %v250 = vunpack.c.l.b16 %v179
    %v251 = vunpack.c.l.b16 %v180
    %v252 = vunpack.c.l.b16 %v181
    %v253 = vunpack.c.l.b16 %v182
    %v254 = vunpack.c.l.b16 %v183
    %v255 = vunpack.c.l.b16 %v184
    %v256 = vunpack.c.l.b16 %v185
    %v257 = vunpack.c.l.b16 %v186
    %v258 = vunpack.c.l.b16 %v187
    %v259 = vunpack.c.l.b16 %v188
    %v260 = vunpack.c.l.b16 %v189
    %v261 = vunpack.c.l.b16 %v190
    %v262 = vunpack.c.l.b16 %v191
    %v263 = vunpack.c.l.b16 %v192
    %v264 = vunpack.c.l.b16 %v193
    %v265 = vunpack.c.l.b16 %v194
    %v266 = vunpack.c.l.b16 %v195
    %v267 = vunpack.c.l.b16 %v196
    %v268 = vunpack.c.l.b16 %v197
    %v269 = vunpack.c.l.b16 %v198
    %v270 = vunpack.c.l.b16 %v199
    %v271 = vunpack.c.l.b16 %v200
    %v272 = vunpack.c.l.b16 %v201
    %v273 = vunpack.c.l.b16 %v202
    %v274 = vunpack.c.l.b16 %v203
    %v275 = vunpack.c.l.b16 %v204
    %v276 = vunpack.c.l.b16 %v205
    %v277 = vunpack.c.l.b16 %v206
    %v278 = vpack.c.b16 %v247, %v246
    %v279 = vpack.c.b16 %v249, %v248
    %v280 = vpack.c.b16 %v251, %v250
    %v281 = vpack.c.b16 %v253, %v252
    %v282 = vpack.c.b16 %v255, %v254
    %v283 = vpack.c.b16 %v257, %v256
    %v284 = vpack.c.b16 %v259, %v258
    %v285 = vpack.c.b16 %v261, %v260
    %v286 = vpack.c.b16 %v263, %v262
    %v287 = vpack.c.b16 %v265, %v264
    %v288 = vpack.c.b16 %v267, %v266
    %v289 = vpack.c.b16 %v269, %v268
    %v290 = vpack.c.b16 %v271, %v270
    %v291 = vpack.c.b16 %v273, %v272
    %v292 = vpack.c.b16 %v275, %v274
    %v293 = vpack.c.b16 %v277, %v276
    %310 = vmatprep.subr.bf16.mxu0 0
    %311 = vmatpush1.bf16.msra.mxu0 %v278
    %312 = vmatprep.subr.bf16.mxu0 0
    %313 = vmatpush1.bf16.msra.mxu0 %v279
    %314 = vmatprep.subr.bf16.mxu0 0
    %315 = vmatpush1.bf16.msra.mxu0 %v280
    %316 = vmatprep.subr.bf16.mxu0 0
    %317 = vmatpush1.bf16.msra.mxu0 %v281
    %318 = vmatprep.subr.bf16.mxu0 0
    %319 = vmatpush1.bf16.msra.mxu0 %v282
    %320 = vmatprep.subr.bf16.mxu0 0
    %321 = vmatpush1.bf16.msra.mxu0 %v283
    %322 = vmatprep.subr.bf16.mxu0 0
    %323 = vmatpush1.bf16.msra.mxu0 %v284
    %324 = vmatprep.subr.bf16.mxu0 0
    %325 = vmatpush1.bf16.msra.mxu0 %v285
    %326 = vmatprep.subr.bf16.mxu0 0
    %327 = vmatpush1.bf16.msra.mxu0 %v286
    %328 = vmatprep.subr.bf16.mxu0 0
    %329 = vmatpush1.bf16.msra.mxu0 %v287
    %330 = vmatprep.subr.bf16.mxu0 0
    %331 = vmatpush1.bf16.msra.mxu0 %v288
    %332 = vmatprep.subr.bf16.mxu0 0
    %333 = vmatpush1.bf16.msra.mxu0 %v289
    %334 = vmatprep.subr.bf16.mxu0 0
    %335 = vmatpush1.bf16.msra.mxu0 %v290
    %336 = vmatprep.subr.bf16.mxu0 0
    %337 = vmatpush1.bf16.msra.mxu0 %v291
    %338 = vmatprep.subr.bf16.mxu0 0
    %339 = vmatpush1.bf16.msra.mxu0 %v292
    %340 = vmatprep.subr.bf16.mxu0 0
    %341 = vmatpush1.bf16.msra.mxu0 %v293
    %342 = vmatprep.mubr.bf16.mxu0 %v174
    %343 = vmatmul.mubr.bf16.gmra.mrb[0].mxu0 %v173
    %v344 = vpop.f32.mrb[0].mxu0
    %v345 = vadd.f32 %v212, %v344
    %v346 = vpop.f32.mrb[0].mxu0
    %v347 = vpop.f32.mrb[0].mxu0
    %v348 = vpop.f32.mrb[0].mxu0
    %349 = vdwg.mxu0
    %v350 = vld [vmem:[#allocation8] sm:$0xf]
    %v351 = vld [vmem:[#allocation8 + $0x4] sm:$0xf]
    %v352 = vld [vmem:[#allocation8 + $0x8] sm:$0xf]
    %v353 = vld [vmem:[#allocation8 + $0xc] sm:$0xf]
    %v354 = vld [vmem:[#allocation8 + $0x10] sm:$0xf]
    %v355 = vld [vmem:[#allocation8 + $0x14] sm:$0xf]
    %v356 = vld [vmem:[#allocation8 + $0x18] sm:$0xf]
    %v357 = vld [vmem:[#allocation8 + $0x1c] sm:$0xf]
    %v358 = vld [vmem:[#allocation8 + $0x20] sm:$0xf]
    %v359 = vld [vmem:[#allocation8 + $0x24] sm:$0xf]
    %v360 = vld [vmem:[#allocation8 + $0x28] sm:$0xf]
    %v361 = vld [vmem:[#allocation8 + $0x2c] sm:$0xf]
    %v362 = vld [vmem:[#allocation8 + $0x30] sm:$0xf]
    %v363 = vld [vmem:[#allocation8 + $0x34] sm:$0xf]
    %v364 = vld [vmem:[#allocation8 + $0x38] sm:$0xf]
    %v365 = vld [vmem:[#allocation8 + $0x3c] sm:$0xf]
    %v366 = vld [vmem:[%s5] sm:$0x1]
    %v368 = vlaneseq
    %v369 = vshrl.u32 %v368, 7
    %v370 = vsub.s32 0, %v369
    %v371 = vrot.slane %v366, %v370
    %v389 = vunpack.c.l.b16 %v350
    %v390 = vunpack.c.l.b16 %v351
    %v391 = vunpack.c.l.b16 %v352
    %v392 = vunpack.c.l.b16 %v353
    %v393 = vunpack.c.l.b16 %v354
    %v394 = vunpack.c.l.b16 %v355
    %v395 = vunpack.c.l.b16 %v356
    %v396 = vunpack.c.l.b16 %v357
    %v397 = vunpack.c.l.b16 %v358
    %v398 = vunpack.c.l.b16 %v359
    %v399 = vunpack.c.l.b16 %v360
    %v400 = vunpack.c.l.b16 %v361
    %v401 = vunpack.c.l.b16 %v362
    %v402 = vunpack.c.l.b16 %v363
    %v403 = vunpack.c.l.b16 %v364
    %v404 = vunpack.c.l.b16 %v365
    %v405 = vpack.c.b16 %v390, %v389
    %v406 = vpack.c.b16 %v392, %v391
    %v407 = vpack.c.b16 %v394, %v393
    %v408 = vpack.c.b16 %v396, %v395
    %v409 = vpack.c.b16 %v398, %v397
    %v410 = vpack.c.b16 %v400, %v399
    %v411 = vpack.c.b16 %v402, %v401
    %v412 = vpack.c.b16 %v404, %v403
    %421 = vmatprep.subr.bf16.mxu0 0
    %422 = vmatpush1.bf16.msra.mxu0 %v405
    %423 = vmatprep.subr.bf16.mxu0 0
    %424 = vmatpush1.bf16.msra.mxu0 %v406
    %425 = vmatprep.subr.bf16.mxu0 0
    %426 = vmatpush1.bf16.msra.mxu0 %v407
    %427 = vmatprep.subr.bf16.mxu0 0
    %428 = vmatpush1.bf16.msra.mxu0 %v408
    %429 = vmatprep.subr.bf16.mxu0 0
    %430 = vmatpush1.bf16.msra.mxu0 %v409
    %431 = vmatprep.subr.bf16.mxu0 0
    %432 = vmatpush1.bf16.msra.mxu0 %v410
    %433 = vmatprep.subr.bf16.mxu0 0
    %434 = vmatpush1.bf16.msra.mxu0 %v411
    %435 = vmatprep.subr.bf16.mxu0 0
    %436 = vmatpush1.bf16.msra.mxu0 %v412
    %437 = vmatprep.subr.bf16.mxu0 0
    %438 = vmatpush1.bf16.msra.mxu0 0
    %439 = vmatprep.subr.bf16.mxu0 0
    %440 = vmatpush1.bf16.msra.mxu0 0
    %441 = vmatprep.subr.bf16.mxu0 0
    %442 = vmatpush1.bf16.msra.mxu0 0
    %443 = vmatprep.subr.bf16.mxu0 0
    %444 = vmatpush1.bf16.msra.mxu0 0
    %445 = vmatprep.subr.bf16.mxu0 0
    %446 = vmatpush1.bf16.msra.mxu0 0
    %447 = vmatprep.subr.bf16.mxu0 0
    %448 = vmatpush1.bf16.msra.mxu0 0
    %449 = vmatprep.subr.bf16.mxu0 0
    %450 = vmatpush1.bf16.msra.mxu0 0
    %451 = vmatprep.subr.bf16.mxu0 0
    %452 = vmatpush1.bf16.msra.mxu0 0
    %453 = vmatprep.mubr.bf16.mxu0 0
    %454 = vmatmul.mubr.bf16.gmra.mrb[0].mxu0 %v173
    %v455 = vpop.f32.mrb[0].mxu0
    %v456 = vadd.f32 %v371, %v455
    %v457 = vpop.f32.mrb[0].mxu0
    %v458 = vpop.f32.mrb[0].mxu0
    %v459 = vpop.f32.mrb[0].mxu0
    %460 = vdwg.mxu0
    %v461 = vld [vmem:[%s6] sm:$0x1]
    %v462 = vld [vmem:[%s7] sm:$0x1]
    %463 = vadd.xlane.f32.xlu0 %v345
    %v464 = vpop.xlane.xlu0 %463
    %v465 = vmul.f32 %v464, 0.0625
    %v466 = vsub.f32 %v345, %v465
    %v467 = vsel %vm151, 1, 0
    %vm468 = vcmp.eq.s32.totalorder %v467, 1
    %v469 = vsel %vm468, %v466, 0.0
    %v470 = vmul.f32 %v469, %v469
    %471 = vadd.xlane.f32.xlu0 %v470
    %v472 = vpop.xlane.xlu0 %471
    %v473 = vmul.f32 %v472, 0.0625
    %v474 = vadd.f32 %v473, 1e-05
    %v475 = vrsqrt.pop %v474
    %v476 = vmul.f32 %v469, %v475
    %v478 = vlaneseq
    %v479 = vshrl.u32 %v478, 7
    %v480 = vsub.s32 0, %v479
    %v481 = vrot.slane %v461, %v480
    %v483 = vmul.f32 %v476, %v481
    %v485 = vlaneseq
    %v486 = vshrl.u32 %v485, 7
    %v487 = vsub.s32 0, %v486
    %v488 = vrot.slane %v462, %v487
    %v490 = vadd.f32 %v483, %v488
    %v491 = vadd.f32 %v456, %v490
    %v492 = vld [vmem:[%s8] sm:$0x1]
    %v493 = vld [vmem:[%s9] sm:$0x1]
    %494 = vadd.xlane.f32.xlu0 %v491
    %v495 = vpop.xlane.xlu0 %494
    %v496 = vmul.f32 %v495, 0.0625
    %v497 = vsub.f32 %v491, %v496
    %v498 = vsel %vm468, %v497, 0.0
    %v499 = vmul.f32 %v498, %v498
    %500 = vadd.xlane.f32.xlu0 %v499
    %v501 = vpop.xlane.xlu0 %500
    %v502 = vmul.f32 %v501, 0.0625
    %v503 = vadd.f32 %v502, 1e-05
    %v504 = vrsqrt.pop %v503
    %v505 = vmul.f32 %v498, %v504
    %v507 = vlaneseq
    %v508 = vshrl.u32 %v507, 7
    %v509 = vsub.s32 0, %v508
    %v510 = vrot.slane %v492, %v509
    %v512 = vmul.f32 %v505, %v510
    %v514 = vlaneseq
    %v515 = vshrl.u32 %v514, 7
    %v516 = vsub.s32 0, %v515
    %v517 = vrot.slane %v493, %v516
    %v519 = vadd.f32 %v512, %v517
    %v520 = vpack.c.bf16 %v519, %v519
    %v521 = vld [vmem:[#allocation10] sm:$0xf]
    %v522 = vld [vmem:[#allocation10 + $0x4] sm:$0xf]
    %v523 = vld [vmem:[#allocation10 + $0x8] sm:$0xf]
    %v524 = vld [vmem:[#allocation10 + $0xc] sm:$0xf]
    %v525 = vld [vmem:[#allocation10 + $0x10] sm:$0xf]
    %v526 = vld [vmem:[#allocation10 + $0x14] sm:$0xf]
    %v527 = vld [vmem:[#allocation10 + $0x18] sm:$0xf]
    %v528 = vld [vmem:[#allocation10 + $0x1c] sm:$0xf]
    %v529 = vld [vmem:[#allocation10 + $0x20] sm:$0xf]
    %v530 = vld [vmem:[#allocation10 + $0x24] sm:$0xf]
    %v531 = vld [vmem:[#allocation10 + $0x28] sm:$0xf]
    %v532 = vld [vmem:[#allocation10 + $0x2c] sm:$0xf]
    %v533 = vld [vmem:[#allocation10 + $0x30] sm:$0xf]
    %v534 = vld [vmem:[#allocation10 + $0x34] sm:$0xf]
    %v535 = vld [vmem:[#allocation10 + $0x38] sm:$0xf]
    %v536 = vld [vmem:[#allocation10 + $0x3c] sm:$0xf]
    %v537 = vld [vmem:[%s11] sm:$0x1]
    %v539 = vlaneseq
    %v540 = vshrl.u32 %v539, 7
    %v541 = vsub.s32 0, %v540
    %v542 = vrot.slane %v537, %v541
    %v560 = vunpack.c.l.b16 %v521
    %v561 = vunpack.c.l.b16 %v522
    %v562 = vunpack.c.l.b16 %v523
    %v563 = vunpack.c.l.b16 %v524
    %v564 = vunpack.c.l.b16 %v525
    %v565 = vunpack.c.l.b16 %v526
    %v566 = vunpack.c.l.b16 %v527
    %v567 = vunpack.c.l.b16 %v528
    %v568 = vunpack.c.l.b16 %v529
    %v569 = vunpack.c.l.b16 %v530
    %v570 = vunpack.c.l.b16 %v531
    %v571 = vunpack.c.l.b16 %v532
    %v572 = vunpack.c.l.b16 %v533
    %v573 = vunpack.c.l.b16 %v534
    %v574 = vunpack.c.l.b16 %v535
    %v575 = vunpack.c.l.b16 %v536
    %v576 = vpack.c.b16 %v561, %v560
    %v577 = vpack.c.b16 %v563, %v562
    %v578 = vpack.c.b16 %v565, %v564
    %v579 = vpack.c.b16 %v567, %v566
    %v580 = vpack.c.b16 %v569, %v568
    %v581 = vpack.c.b16 %v571, %v570
    %v582 = vpack.c.b16 %v573, %v572
    %v583 = vpack.c.b16 %v575, %v574
    %592 = vmatprep.subr.bf16.mxu0 0
    %593 = vmatpush1.bf16.msra.mxu0 %v576
    %594 = vmatprep.subr.bf16.mxu0 0
    %595 = vmatpush1.bf16.msra.mxu0 %v577
    %596 = vmatprep.subr.bf16.mxu0 0
    %597 = vmatpush1.bf16.msra.mxu0 %v578
    %598 = vmatprep.subr.bf16.mxu0 0
    %599 = vmatpush1.bf16.msra.mxu0 %v579
    %600 = vmatprep.subr.bf16.mxu0 0
    %601 = vmatpush1.bf16.msra.mxu0 %v580
    %602 = vmatprep.subr.bf16.mxu0 0
    %603 = vmatpush1.bf16.msra.mxu0 %v581
    %604 = vmatprep.subr.bf16.mxu0 0
    %605 = vmatpush1.bf16.msra.mxu0 %v582
    %606 = vmatprep.subr.bf16.mxu0 0
    %607 = vmatpush1.bf16.msra.mxu0 %v583
    %608 = vmatprep.subr.bf16.mxu0 0
    %609 = vmatpush1.bf16.msra.mxu0 0
    %610 = vmatprep.subr.bf16.mxu0 0
    %611 = vmatpush1.bf16.msra.mxu0 0
    %612 = vmatprep.subr.bf16.mxu0 0
    %613 = vmatpush1.bf16.msra.mxu0 0
    %614 = vmatprep.subr.bf16.mxu0 0
    %615 = vmatpush1.bf16.msra.mxu0 0
    %616 = vmatprep.subr.bf16.mxu0 0
    %617 = vmatpush1.bf16.msra.mxu0 0
    %618 = vmatprep.subr.bf16.mxu0 0
    %619 = vmatpush1.bf16.msra.mxu0 0
    %620 = vmatprep.subr.bf16.mxu0 0
    %621 = vmatpush1.bf16.msra.mxu0 0
    %622 = vmatprep.subr.bf16.mxu0 0
    %623 = vmatpush1.bf16.msra.mxu0 0
    %624 = vmatprep.mubr.bf16.mxu0 0
    %625 = vmatmul.mubr.bf16.gmra.mrb[0].mxu0 %v520
    %v626 = vpop.f32.mrb[0].mxu0
    %v627 = vadd.f32 %v542, %v626
    %v628 = vpop.f32.mrb[0].mxu0
    %v629 = vpop.f32.mrb[0].mxu0
    %v630 = vpop.f32.mrb[0].mxu0
    %631 = vdwg.mxu0
    %v632 = vmax.f32 %v627, 0.0
    %v633 = vpack.c.bf16 %v632, %v632
    %v634 = vld [vmem:[#allocation11] sm:$0xf]
    %v635 = vld [vmem:[#allocation11 + $0x4] sm:$0xf]
    %v636 = vld [vmem:[#allocation11 + $0x8] sm:$0xf]
    %v637 = vld [vmem:[#allocation11 + $0xc] sm:$0xf]
    %v638 = vld [vmem:[#allocation11 + $0x10] sm:$0xf]
    %v639 = vld [vmem:[#allocation11 + $0x14] sm:$0xf]
    %v640 = vld [vmem:[#allocation11 + $0x18] sm:$0xf]
    %v641 = vld [vmem:[#allocation11 + $0x1c] sm:$0xf]
    %v642 = vld [vmem:[#allocation11 + $0x20] sm:$0xf]
    %v643 = vld [vmem:[#allocation11 + $0x24] sm:$0xf]
    %v644 = vld [vmem:[#allocation11 + $0x28] sm:$0xf]
    %v645 = vld [vmem:[#allocation11 + $0x2c] sm:$0xf]
    %v646 = vld [vmem:[#allocation11 + $0x30] sm:$0xf]
    %v647 = vld [vmem:[#allocation11 + $0x34] sm:$0xf]
    %v648 = vld [vmem:[#allocation11 + $0x38] sm:$0xf]
    %v649 = vld [vmem:[#allocation11 + $0x3c] sm:$0xf]
    %v650 = vld [vmem:[%s13] sm:$0x1]
    %v652 = vlaneseq
    %v653 = vshrl.u32 %v652, 7
    %v654 = vsub.s32 0, %v653
    %v655 = vrot.slane %v650, %v654
    %v673 = vunpack.c.l.b16 %v634
    %v674 = vunpack.c.l.b16 %v635
    %v675 = vunpack.c.l.b16 %v636
    %v676 = vunpack.c.l.b16 %v637
    %v677 = vunpack.c.l.b16 %v638
    %v678 = vunpack.c.l.b16 %v639
    %v679 = vunpack.c.l.b16 %v640
    %v680 = vunpack.c.l.b16 %v641
    %v681 = vunpack.c.l.b16 %v642
    %v682 = vunpack.c.l.b16 %v643
    %v683 = vunpack.c.l.b16 %v644
    %v684 = vunpack.c.l.b16 %v645
    %v685 = vunpack.c.l.b16 %v646
    %v686 = vunpack.c.l.b16 %v647
    %v687 = vunpack.c.l.b16 %v648
    %v688 = vunpack.c.l.b16 %v649
    %v689 = vpack.c.b16 %v674, %v673
    %v690 = vpack.c.b16 %v676, %v675
    %v691 = vpack.c.b16 %v678, %v677
    %v692 = vpack.c.b16 %v680, %v679
    %v693 = vpack.c.b16 %v682, %v681
    %v694 = vpack.c.b16 %v684, %v683
    %v695 = vpack.c.b16 %v686, %v685
    %v696 = vpack.c.b16 %v688, %v687
    %705 = vmatprep.subr.bf16.mxu0 0
    %706 = vmatpush1.bf16.msra.mxu0 %v689
    %707 = vmatprep.subr.bf16.mxu0 0
    %708 = vmatpush1.bf16.msra.mxu0 %v690
    %709 = vmatprep.subr.bf16.mxu0 0
    %710 = vmatpush1.bf16.msra.mxu0 %v691
    %711 = vmatprep.subr.bf16.mxu0 0
    %712 = vmatpush1.bf16.msra.mxu0 %v692
    %713 = vmatprep.subr.bf16.mxu0 0
    %714 = vmatpush1.bf16.msra.mxu0 %v693
    %715 = vmatprep.subr.bf16.mxu0 0
    %716 = vmatpush1.bf16.msra.mxu0 %v694
    %717 = vmatprep.subr.bf16.mxu0 0
    %718 = vmatpush1.bf16.msra.mxu0 %v695
    %719 = vmatprep.subr.bf16.mxu0 0
    %720 = vmatpush1.bf16.msra.mxu0 %v696
    %721 = vmatprep.subr.bf16.mxu0 0
    %722 = vmatpush1.bf16.msra.mxu0 0
    %723 = vmatprep.subr.bf16.mxu0 0
    %724 = vmatpush1.bf16.msra.mxu0 0
    %725 = vmatprep.subr.bf16.mxu0 0
    %726 = vmatpush1.bf16.msra.mxu0 0
    %727 = vmatprep.subr.bf16.mxu0 0
    %728 = vmatpush1.bf16.msra.mxu0 0
    %729 = vmatprep.subr.bf16.mxu0 0
    %730 = vmatpush1.bf16.msra.mxu0 0
    %731 = vmatprep.subr.bf16.mxu0 0
    %732 = vmatpush1.bf16.msra.mxu0 0
    %733 = vmatprep.subr.bf16.mxu0 0
    %734 = vmatpush1.bf16.msra.mxu0 0
    %735 = vmatprep.subr.bf16.mxu0 0
    %736 = vmatpush1.bf16.msra.mxu0 0
    %737 = vmatprep.mubr.bf16.mxu0 0
    %738 = vmatmul.mubr.bf16.gmra.mrb[0].mxu0 %v633
    %v739 = vpop.f32.mrb[0].mxu0
    %v740 = vadd.f32 %v655, %v739
    %v741 = vpop.f32.mrb[0].mxu0
    %v742 = vpop.f32.mrb[0].mxu0
    %v743 = vpop.f32.mrb[0].mxu0
    %744 = vdwg.mxu0
    %v745 = vadd.f32 %v740, %v519
    %746 = vadd.xlane.f32.xlu0 %v745
    %v747 = vpop.xlane.xlu0 %746
    %v748 = vmul.f32 %v747, 0.0625
    %v749 = vsub.f32 %v745, %v748
    %v750 = vsel %vm468, %v749, 0.0
    %v751 = vmul.f32 %v750, %v750
    %752 = vadd.xlane.f32.xlu0 %v751
    %v753 = vpop.xlane.xlu0 %752
    %v754 = vmul.f32 %v753, 0.0625
    %v755 = vadd.f32 %v754, 1e-05
    %v756 = vrsqrt.pop %v755
    %v757 = vmul.f32 %v750, %v756
    %v758 = vmul.f32 %v757, %v510
    %v759 = vadd.f32 %v758, %v517
    %v760 = vpack.c.bf16 %v759, %v759
    %v761 = vld [vmem:[#allocation13] sm:$0xf]
    %v762 = vld [vmem:[#allocation13 + $0x4] sm:$0xf]
    %v763 = vld [vmem:[#allocation13 + $0x8] sm:$0xf]
    %v764 = vld [vmem:[#allocation13 + $0xc] sm:$0xf]
    %v765 = vld [vmem:[#allocation13 + $0x10] sm:$0xf]
    %v766 = vld [vmem:[#allocation13 + $0x14] sm:$0xf]
    %v767 = vld [vmem:[#allocation13 + $0x18] sm:$0xf]
    %v768 = vld [vmem:[#allocation13 + $0x1c] sm:$0xf]
    %v769 = vld [vmem:[#allocation13 + $0x20] sm:$0xf]
    %v770 = vld [vmem:[#allocation13 + $0x24] sm:$0xf]
    %v771 = vld [vmem:[#allocation13 + $0x28] sm:$0xf]
    %v772 = vld [vmem:[#allocation13 + $0x2c] sm:$0xf]
    %v773 = vld [vmem:[#allocation13 + $0x30] sm:$0xf]
    %v774 = vld [vmem:[#allocation13 + $0x34] sm:$0xf]
    %v775 = vld [vmem:[#allocation13 + $0x38] sm:$0xf]
    %v776 = vld [vmem:[#allocation13 + $0x3c] sm:$0xf]
    %v777 = vld [vmem:[%s15] sm:$0x1]
    %v779 = vlaneseq
    %v780 = vshrl.u32 %v779, 7
    %v781 = vsub.s32 0, %v780
    %v782 = vrot.slane %v777, %v781
    %v800 = vunpack.c.l.b16 %v761
    %v801 = vunpack.c.l.b16 %v762
    %v802 = vunpack.c.l.b16 %v763
    %v803 = vunpack.c.l.b16 %v764
    %v804 = vunpack.c.l.b16 %v765
    %v805 = vunpack.c.l.b16 %v766
    %v806 = vunpack.c.l.b16 %v767
    %v807 = vunpack.c.l.b16 %v768
    %v808 = vunpack.c.l.b16 %v769
    %v809 = vunpack.c.l.b16 %v770
    %v810 = vunpack.c.l.b16 %v771
    %v811 = vunpack.c.l.b16 %v772
    %v812 = vunpack.c.l.b16 %v773
    %v813 = vunpack.c.l.b16 %v774
    %v814 = vunpack.c.l.b16 %v775
    %v815 = vunpack.c.l.b16 %v776
    %v816 = vpack.c.b16 %v801, %v800
    %v817 = vpack.c.b16 %v803, %v802
    %v818 = vpack.c.b16 %v805, %v804
    %v819 = vpack.c.b16 %v807, %v806
    %v820 = vpack.c.b16 %v809, %v808
    %v821 = vpack.c.b16 %v811, %v810
    %v822 = vpack.c.b16 %v813, %v812
    %v823 = vpack.c.b16 %v815, %v814
    %832 = vmatprep.subr.bf16.mxu0 0
    %833 = vmatpush1.bf16.msra.mxu0 %v816
    %834 = vmatprep.subr.bf16.mxu0 0
    %835 = vmatpush1.bf16.msra.mxu0 %v817
    %836 = vmatprep.subr.bf16.mxu0 0
    %837 = vmatpush1.bf16.msra.mxu0 %v818
    %838 = vmatprep.subr.bf16.mxu0 0
    %839 = vmatpush1.bf16.msra.mxu0 %v819
    %840 = vmatprep.subr.bf16.mxu0 0
    %841 = vmatpush1.bf16.msra.mxu0 %v820
    %842 = vmatprep.subr.bf16.mxu0 0
    %843 = vmatpush1.bf16.msra.mxu0 %v821
    %844 = vmatprep.subr.bf16.mxu0 0
    %845 = vmatpush1.bf16.msra.mxu0 %v822
    %846 = vmatprep.subr.bf16.mxu0 0
    %847 = vmatpush1.bf16.msra.mxu0 %v823
    %848 = vmatprep.subr.bf16.mxu0 0
    %849 = vmatpush1.bf16.msra.mxu0 0
    %850 = vmatprep.subr.bf16.mxu0 0
    %851 = vmatpush1.bf16.msra.mxu0 0
    %852 = vmatprep.subr.bf16.mxu0 0
    %853 = vmatpush1.bf16.msra.mxu0 0
    %854 = vmatprep.subr.bf16.mxu0 0
    %855 = vmatpush1.bf16.msra.mxu0 0
    %856 = vmatprep.subr.bf16.mxu0 0
    %857 = vmatpush1.bf16.msra.mxu0 0
    %858 = vmatprep.subr.bf16.mxu0 0
    %859 = vmatpush1.bf16.msra.mxu0 0
    %860 = vmatprep.subr.bf16.mxu0 0
    %861 = vmatpush1.bf16.msra.mxu0 0
    %862 = vmatprep.subr.bf16.mxu0 0
    %863 = vmatpush1.bf16.msra.mxu0 0
    %864 = vmatprep.mubr.bf16.mxu0 0
    %865 = vmatmul.mubr.bf16.gmra.mrb[0].mxu0 %v760
    %v866 = vpop.f32.mrb[0].mxu0
    %v867 = vadd.f32 %v782, %v866
    %v868 = vpop.f32.mrb[0].mxu0
    %v869 = vpop.f32.mrb[0].mxu0
    %v870 = vpop.f32.mrb[0].mxu0
    %871 = vdwg.mxu0
    %v872 = vmul.f32 %v867, %v171
    %v873 = vadd.f32 %v872, %v154
    %874 = vst [vmem:[#allocation14] sm:$0xff] %v873
    // Predicated region
    $region94: #{tpu_custom_call.1} parent=1 // pred_check
      _
    $region95: #{tpu_custom_call.1} parent=1 // pred_check_branch
      %876 = sbr.rel (0) target = $region97
    $region96: #{tpu_custom_call.1} parent=1 // pred_region
      %s878 = ssub.s32 128, 128
      %879 = vsyncadd [#allocation4], %s878
      %s881 = sshll.u32 [#allocation14], 4
      %s882 = int_to_ptr.vmem [resolvable:$true] %s881
      %884 = dma.vmem_to_hbm [thread:$0]  %s882, 128, %s16, [#allocation4]
    $region97: #{tpu_custom_call.1} parent=1 // pred_fallthru
      _
    // Predicated region
    $region98: #{tpu_custom_call.1} parent=1 // pred_check
      _
    $region99: #{tpu_custom_call.1} parent=1 // pred_check_branch
      %886 = sbr.rel (0) target = $region101
    $region100: #{tpu_custom_call.1} parent=1 // pred_region
      %887 = dma.done [#allocation4], 128
    $region101: #{tpu_custom_call.1} parent=1 // pred_fallthru
      _
    %888 = vsyncpa [#allocation3], 1
    %889 = vsyncpa [#allocation6], 1
    %890 = vsyncpa [#allocation9], 1
    %891 = vsyncpa [#allocation12], 1
    %892 = vsyncpa [#allocation4], 1

</llo_original>
